<compile_context>
chip_gen: v6e
topology: v6e:2x2x1
jax: 0.10.0
libtpu: 0.0.40
codegen_flags: <defaults>
</compile_context>

<pallas_src>
import functools

import numpy as np
import jax
import jax.numpy as jnp
from jax import lax
from jax.experimental import pallas as pl
from jax.experimental.pallas import tpu as pltpu


def _fast_recip(x):
    # EUP approximate reciprocal + one Newton-Raphson step (~full f32 accuracy,
    # keeps the VALU free of divide sequences).
    r = pl.reciprocal(x, approx=True)
    return r * (2.0 - x * r)


def _conv_caps_fused_kernel(w_ref, x_ref, v_ref, u_sc, *, B, N, K, num_iterations):
    # w_ref : (O*B*C*K,) f32 in SMEM  — row-major flat view of weight (O, B, C, K)
    # x_ref : (B, C, oh, ow) f32 VMEM — x.view(B, C, H*W) reinterpreted as (oh, ow)
    # v_ref : (C, O, ow) f32 output block for batch bb = program_id(0)
    # u_sc  : (C, O, oh, ow) f32 VMEM scratch holding u_hat[bb] in routing layout
    bb = pl.program_id(0)

    # ------------------------------------------------------------------
    # Stage 1 — u_hat[bb] via VPU broadcast-FMAs (no MXU: contraction is K=3).
    # torch: result[o2,b2,k2,hw] = sum_m weight[o2,b2,k2,m] * x[b2,m,hw]
    #        u_hat = result.view(B, C, O, oh, ow).permute(0, 3, 4, 1, 2)
    # Flat-index bookkeeping of that .view:
    #   row q = bb*N*N + c*N + o == (o2*B + b2)*N + k2
    # so the weight scalars for (bb, c, o) are w_flat[q*K : q*K + K] and the x
    # batch row is b2 = (q // N) % B = (bb*N + c) % B.
    # ------------------------------------------------------------------
    w_base = bb * (N * N * K)
    for c in range(N):
        b2 = (bb * N + c) % B                    # dynamic (depends on program id)
        xb = x_ref[b2]                           # (C, oh, ow) dynamic leading-axis load
        for o in range(N):
            j = c * N + o
            acc = w_ref[w_base + j * K] * xb[0]
            for m in range(1, K):
                acc = acc + w_ref[w_base + j * K + m] * xb[m]
            u_sc[c, o, :, :] = acc               # static scratch indices

    u = u_sc[...]                                # (C, O, oh, ow) float32
    _, _, oh, ow = u_sc.shape

    # ------------------------------------------------------------------
    # Stage 2 — dynamic routing, entirely in VMEM/registers (no HBM round trip).
    # Layout [c, o, oh, ow]: softmax / s-sum reduce the sublane axis (oh); the
    # out_channels reductions hit leading axes — no width-3 lane reductions.
    # ------------------------------------------------------------------
    logits = jnp.zeros((N, oh, ow), jnp.float32)     # torch b[bb,:,:,o,0] -> [o, oh, ow]
    v = jnp.zeros((N, N, 1, ow), jnp.float32)
    for it in range(num_iterations):
        # c = softmax(b, dim=out_h)
        mx = jnp.max(logits, axis=1, keepdims=True)
        e = jnp.exp(logits - mx)
        coef = e * _fast_recip(jnp.sum(e, axis=1, keepdims=True))
        # c = c / (sum(c, dim=out_channels) + 1e-10)
        coef = coef * _fast_recip(jnp.sum(coef, axis=0, keepdims=True) + 1e-10)
        # s = (c * u_hat).sum(dim=out_h)   (relies on out_channels == num_caps)
        s = jnp.sum(coef[:, None, :, :] * u, axis=2, keepdims=True)    # (C, O, 1, ow)
        # v = squash(s) along out_channels
        # TODO(synk): squash() is undefined in the source module; the standard capsule
        # squash (|s|^2/(1+|s|^2)) * s/|s| with eps=1e-8 inside the sqrt is assumed.
        sq = jnp.sum(s * s, axis=1, keepdims=True)                      # (C, 1, 1, ow)
        v = s * (sq * lax.rsqrt(sq + 1e-8) * _fast_recip(1.0 + sq))
        if it < num_iterations - 1:
            # b = b + (v * u_hat).sum(dim=-1)
            logits = logits + jnp.sum(v * u, axis=1)                    # (C, oh, ow)

    v_ref[...] = v[:, :, 0, :].astype(v_ref.dtype)                      # (C, O, ow)


def conv_caps_forward(x, weight, *, kernel_size, stride, padding,
                      num_routes=-1, num_iterations=3):
    B, num_caps, H, W = x.shape
    out_channels, in_channels, K, K2 = weight.shape
    assert K == K2 == kernel_size
    assert kernel_size == num_caps, "torch.matmul needs kernel_size == num_caps"
    assert in_channels == B, "batch-dim broadcast needs in_channels == batch_size"
    assert out_channels == num_caps, "routing broadcast needs out_channels == num_caps"
    assert num_iterations >= 1

    out_h = (H - kernel_size + 2 * padding) // stride + 1
    out_w = (W - kernel_size + 2 * padding) // stride + 1
    assert out_h * out_w == H * W, ".view after matmul needs out_h*out_w == H*W"

    N = num_caps
    # Flat-order-preserving reinterpretations done once in the wrapper (no compute):
    x4 = x.reshape(B, N, out_h, out_w).astype(jnp.float32)   # x.view(B,C,H*W) as (oh,ow)
    w_flat = weight.reshape(-1).astype(jnp.float32)          # element ((o*B+b)*C+c)*K + m

    kernel = functools.partial(_conv_caps_fused_kernel, B=B, N=N, K=K,
                               num_iterations=num_iterations)
    v_raw = pl.pallas_call(
        kernel,
        out_shape=jax.ShapeDtypeStruct((B, N, N, out_w), jnp.float32),
        grid=(B,),
        in_specs=[
            pl.BlockSpec(memory_space=pltpu.MemorySpace.SMEM),            # weight scalars
            pl.BlockSpec((B, N, out_h, out_w), lambda b: (0, 0, 0, 0)),   # x, resident in VMEM
        ],
        out_specs=pl.BlockSpec((None, N, N, out_w), lambda b: (b, 0, 0, 0)),
        scratch_shapes=[pltpu.VMEM((N, N, out_h, out_w), jnp.float32)],
        compiler_params=pltpu.CompilerParams(
            dimension_semantics=("parallel",)),                           # 2 TCs on v7x
    )(w_flat, x4)

    # (B, C, O, ow) -> (B, ow, C, O): tiny output-layout transpose (B*ow*C*O floats).
    return jnp.transpose(v_raw, (0, 3, 1, 2))


# ----------------------------------------------------------------------------
# Pure-JAX reference (mirrors the PyTorch code line by line) for verification.
# ----------------------------------------------------------------------------
def conv_caps_reference(x, weight, *, kernel_size, stride, padding, num_iterations):
    B, num_caps, H, W = x.shape
    out_channels = weight.shape[0]
    out_h = (H - kernel_size + 2 * padding) // stride + 1
    out_w = (W - kernel_size + 2 * padding) // stride + 1
    result = jnp.matmul(weight, x.reshape(B, num_caps, H * W),
                        precision=jax.lax.Precision.HIGHEST)      # (O, B, C, HW)
    u_hat = result.reshape(B, num_caps, out_channels, out_h, out_w)
    u_hat = jnp.transpose(u_hat, (0, 3, 4, 1, 2))
    b = jnp.zeros((B, out_h, out_w, out_channels, 1), jnp.float32)
    v = None
    for i in range(num_iterations):
        c = jax.nn.softmax(b, axis=1)
        c = c / (jnp.sum(c, axis=3, keepdims=True) + 1e-10)
        s = jnp.sum(c * u_hat, axis=1, keepdims=True)
        sq = jnp.sum(s * s, axis=-1, keepdims=True)
        v = (sq / (1.0 + sq)) * s / jnp.sqrt(sq + 1e-8)
        if i < num_iterations - 1:
            b = b + jnp.sum(v * u_hat, axis=-1, keepdims=True)
    return jnp.squeeze(v, axis=1)


if __name__ == "__main__":
    key = jax.random.PRNGKey(0)
    kx, kw = jax.random.split(key)

    # Small shapes consistent with the module's implicit constraints:
    B, num_caps, H, W = 2, 3, 8, 8
    kernel_size = num_caps          # 3  (required by torch.matmul inner dim)
    in_channels = B                 # 2  (required by batch-dim broadcast)
    out_channels = num_caps         # 3  (required by the routing broadcast)
    stride, padding = 1, 1          # -> out_h*out_w == H*W
    num_routes, num_iterations = -1, 3

    x = jax.random.normal(kx, (B, num_caps, H, W), dtype=jnp.float32)
    weight = jax.random.normal(
        kw, (out_channels, in_channels, kernel_size, kernel_size), dtype=jnp.float32)

    v = conv_caps_forward(x, weight, kernel_size=kernel_size, stride=stride,
                          padding=padding, num_routes=num_routes,
                          num_iterations=num_iterations)
    v = jax.block_until_ready(v)

    out_w = (W - kernel_size + 2 * padding) // stride + 1
    assert v.shape == (B, out_w, num_caps, out_channels), v.shape

    v_ref = jax.block_until_ready(
        conv_caps_reference(x, weight, kernel_size=kernel_size, stride=stride,
                            padding=padding, num_iterations=num_iterations))
    if not np.allclose(np.asarray(v), np.asarray(v_ref), rtol=1e-3, atol=1e-3):
        raise AssertionError("Pallas kernel output mismatches pure-JAX reference")

    print("KERNEL_OK")
</pallas_src>

<mosaic_0001>
module attributes {stable_mosaic.version = 11 : i64} {
  func.func @_conv_caps_fused_kernel(%arg0: i32, %arg1: memref<54xf32, #tpu.memory_space<smem>>, %arg2: memref<2x3x8x8xf32, #tpu.memory_space<vmem>>, %arg3: memref<1x3x3x8xf32, #tpu.memory_space<vmem>>, %arg4: memref<3x3x8x8xf32, #tpu.memory_space<vmem>>) attributes {dimension_semantics = [#tpu.dimension_semantics<parallel>], iteration_bounds = array<i64: 2>, scalar_prefetch = 0 : i64, scratch_operands = 1 : i64, tpu.core_type = #tpu.core_type<tc>, window_params = [{transform_indices = @transform_0, window_bounds = array<i64: 54>}, {pipeline_mode = #tpu.pipeline_mode<synchronous>, transform_indices = @transform_1, window_bounds = array<i64: 2, 3, 8, 8>}, {transform_indices = @transform_2, window_bounds = array<i64: 1, 3, 3, 8>}]} {
    %c27_i32 = arith.constant 27 : i32
    %0 = arith.muli %arg0, %c27_i32 : i32
    %c3_i32 = arith.constant 3 : i32
    %1 = arith.muli %arg0, %c3_i32 : i32
    %c0_i32 = arith.constant 0 : i32
    %2 = arith.addi %1, %c0_i32 : i32
    %c2_i32 = arith.constant 2 : i32
    %c0_i32_0 = arith.constant 0 : i32
    %3 = arith.cmpi eq, %c2_i32, %c0_i32_0 : i32
    %c1_i32 = arith.constant 1 : i32
    %4 = arith.select %3, %c1_i32, %c2_i32 : i32
    %5 = arith.remsi %2, %4 : i32
    %c0_i32_1 = arith.constant 0 : i32
    %6 = arith.cmpi ne, %5, %c0_i32_1 : i32
    %c0_i32_2 = arith.constant 0 : i32
    %7 = arith.cmpi slt, %5, %c0_i32_2 : i32
    %c0_i32_3 = arith.constant 0 : i32
    %8 = arith.cmpi slt, %4, %c0_i32_3 : i32
    %9 = arith.xori %7, %8 : i1
    %10 = arith.andi %9, %6 : i1
    %11 = arith.addi %5, %4 : i32
    %12 = arith.select %10, %11, %5 : i32
    %13 = arith.index_cast %12 : i32 to index
    %c0 = arith.constant 0 : index
    %c0_4 = arith.constant 0 : index
    %c0_5 = arith.constant 0 : index
    %14 = vector.load %arg2[%13, %c0, %c0_4, %c0_5] : memref<2x3x8x8xf32, #tpu.memory_space<vmem>>, vector<1x3x8x8xf32>
    %15 = vector.shape_cast %14 : vector<1x3x8x8xf32> to vector<3x8x8xf32>
    %c0_i32_6 = arith.constant 0 : i32
    %16 = arith.addi %0, %c0_i32_6 : i32
    %17 = arith.index_cast %16 : i32 to index
    %18 = memref.load %arg1[%17] : memref<54xf32, #tpu.memory_space<smem>>
    %19 = vector.extract_strided_slice %15 {offsets = [0, 0, 0], sizes = [1, 8, 8], strides = [1, 1, 1]} : vector<3x8x8xf32> to vector<1x8x8xf32>
    %20 = vector.shape_cast %19 : vector<1x8x8xf32> to vector<8x8xf32>
    %21 = vector.broadcast %18 : f32 to vector<8x8xf32>
    %22 = arith.mulf %21, %20 : vector<8x8xf32>
    %c0_i32_7 = arith.constant 0 : i32
    %23 = arith.addi %0, %c0_i32_7 : i32
    %c1_i32_8 = arith.constant 1 : i32
    %24 = arith.addi %23, %c1_i32_8 : i32
    %25 = arith.index_cast %24 : i32 to index
    %26 = memref.load %arg1[%25] : memref<54xf32, #tpu.memory_space<smem>>
    %27 = vector.extract_strided_slice %15 {offsets = [1, 0, 0], sizes = [1, 8, 8], strides = [1, 1, 1]} : vector<3x8x8xf32> to vector<1x8x8xf32>
    %28 = vector.shape_cast %27 : vector<1x8x8xf32> to vector<8x8xf32>
    %29 = vector.broadcast %26 : f32 to vector<8x8xf32>
    %30 = arith.mulf %29, %28 : vector<8x8xf32>
    %31 = arith.addf %22, %30 : vector<8x8xf32>
    %c0_i32_9 = arith.constant 0 : i32
    %32 = arith.addi %0, %c0_i32_9 : i32
    %c2_i32_10 = arith.constant 2 : i32
    %33 = arith.addi %32, %c2_i32_10 : i32
    %34 = arith.index_cast %33 : i32 to index
    %35 = memref.load %arg1[%34] : memref<54xf32, #tpu.memory_space<smem>>
    %36 = vector.extract_strided_slice %15 {offsets = [2, 0, 0], sizes = [1, 8, 8], strides = [1, 1, 1]} : vector<3x8x8xf32> to vector<1x8x8xf32>
    %37 = vector.shape_cast %36 : vector<1x8x8xf32> to vector<8x8xf32>
    %38 = vector.broadcast %35 : f32 to vector<8x8xf32>
    %39 = arith.mulf %38, %37 : vector<8x8xf32>
    %40 = arith.addf %31, %39 : vector<8x8xf32>
    %c0_11 = arith.constant 0 : index
    %c0_12 = arith.constant 0 : index
    %c0_13 = arith.constant 0 : index
    %c0_14 = arith.constant 0 : index
    %41 = vector.load %arg4[%c0_11, %c0_12, %c0_13, %c0_14] : memref<3x3x8x8xf32, #tpu.memory_space<vmem>>, vector<1x1x8x8xf32>
    %42 = vector.shape_cast %41 : vector<1x1x8x8xf32> to vector<8x8xf32>
    %43 = vector.shape_cast %40 : vector<8x8xf32> to vector<1x1x8x8xf32>
    tpu.vector_store %arg4[%c0_11, %c0_12, %c0_13, %c0_14], %43 {strides = array<i32>} : memref<3x3x8x8xf32, #tpu.memory_space<vmem>>, vector<1x1x8x8xf32>,
    %c3_i32_15 = arith.constant 3 : i32
    %44 = arith.addi %0, %c3_i32_15 : i32
    %45 = arith.index_cast %44 : i32 to index
    %46 = memref.load %arg1[%45] : memref<54xf32, #tpu.memory_space<smem>>
    %47 = vector.extract_strided_slice %15 {offsets = [0, 0, 0], sizes = [1, 8, 8], strides = [1, 1, 1]} : vector<3x8x8xf32> to vector<1x8x8xf32>
    %48 = vector.shape_cast %47 : vector<1x8x8xf32> to vector<8x8xf32>
    %49 = vector.broadcast %46 : f32 to vector<8x8xf32>
    %50 = arith.mulf %49, %48 : vector<8x8xf32>
    %c3_i32_16 = arith.constant 3 : i32
    %51 = arith.addi %0, %c3_i32_16 : i32
    %c1_i32_17 = arith.constant 1 : i32
    %52 = arith.addi %51, %c1_i32_17 : i32
    %53 = arith.index_cast %52 : i32 to index
    %54 = memref.load %arg1[%53] : memref<54xf32, #tpu.memory_space<smem>>
    %55 = vector.extract_strided_slice %15 {offsets = [1, 0, 0], sizes = [1, 8, 8], strides = [1, 1, 1]} : vector<3x8x8xf32> to vector<1x8x8xf32>
    %56 = vector.shape_cast %55 : vector<1x8x8xf32> to vector<8x8xf32>
    %57 = vector.broadcast %54 : f32 to vector<8x8xf32>
    %58 = arith.mulf %57, %56 : vector<8x8xf32>
    %59 = arith.addf %50, %58 : vector<8x8xf32>
    %c3_i32_18 = arith.constant 3 : i32
    %60 = arith.addi %0, %c3_i32_18 : i32
    %c2_i32_19 = arith.constant 2 : i32
    %61 = arith.addi %60, %c2_i32_19 : i32
    %62 = arith.index_cast %61 : i32 to index
    %63 = memref.load %arg1[%62] : memref<54xf32, #tpu.memory_space<smem>>
    %64 = vector.extract_strided_slice %15 {offsets = [2, 0, 0], sizes = [1, 8, 8], strides = [1, 1, 1]} : vector<3x8x8xf32> to vector<1x8x8xf32>
    %65 = vector.shape_cast %64 : vector<1x8x8xf32> to vector<8x8xf32>
    %66 = vector.broadcast %63 : f32 to vector<8x8xf32>
    %67 = arith.mulf %66, %65 : vector<8x8xf32>
    %68 = arith.addf %59, %67 : vector<8x8xf32>
    %c0_20 = arith.constant 0 : index
    %c1 = arith.constant 1 : index
    %c0_21 = arith.constant 0 : index
    %c0_22 = arith.constant 0 : index
    %69 = vector.load %arg4[%c0_20, %c1, %c0_21, %c0_22] : memref<3x3x8x8xf32, #tpu.memory_space<vmem>>, vector<1x1x8x8xf32>
    %70 = vector.shape_cast %69 : vector<1x1x8x8xf32> to vector<8x8xf32>
    %71 = vector.shape_cast %68 : vector<8x8xf32> to vector<1x1x8x8xf32>
    tpu.vector_store %arg4[%c0_20, %c1, %c0_21, %c0_22], %71 {strides = array<i32>} : memref<3x3x8x8xf32, #tpu.memory_space<vmem>>, vector<1x1x8x8xf32>,
    %c6_i32 = arith.constant 6 : i32
    %72 = arith.addi %0, %c6_i32 : i32
    %73 = arith.index_cast %72 : i32 to index
    %74 = memref.load %arg1[%73] : memref<54xf32, #tpu.memory_space<smem>>
    %75 = vector.extract_strided_slice %15 {offsets = [0, 0, 0], sizes = [1, 8, 8], strides = [1, 1, 1]} : vector<3x8x8xf32> to vector<1x8x8xf32>
    %76 = vector.shape_cast %75 : vector<1x8x8xf32> to vector<8x8xf32>
    %77 = vector.broadcast %74 : f32 to vector<8x8xf32>
    %78 = arith.mulf %77, %76 : vector<8x8xf32>
    %c6_i32_23 = arith.constant 6 : i32
    %79 = arith.addi %0, %c6_i32_23 : i32
    %c1_i32_24 = arith.constant 1 : i32
    %80 = arith.addi %79, %c1_i32_24 : i32
    %81 = arith.index_cast %80 : i32 to index
    %82 = memref.load %arg1[%81] : memref<54xf32, #tpu.memory_space<smem>>
    %83 = vector.extract_strided_slice %15 {offsets = [1, 0, 0], sizes = [1, 8, 8], strides = [1, 1, 1]} : vector<3x8x8xf32> to vector<1x8x8xf32>
    %84 = vector.shape_cast %83 : vector<1x8x8xf32> to vector<8x8xf32>
    %85 = vector.broadcast %82 : f32 to vector<8x8xf32>
    %86 = arith.mulf %85, %84 : vector<8x8xf32>
    %87 = arith.addf %78, %86 : vector<8x8xf32>
    %c6_i32_25 = arith.constant 6 : i32
    %88 = arith.addi %0, %c6_i32_25 : i32
    %c2_i32_26 = arith.constant 2 : i32
    %89 = arith.addi %88, %c2_i32_26 : i32
    %90 = arith.index_cast %89 : i32 to index
    %91 = memref.load %arg1[%90] : memref<54xf32, #tpu.memory_space<smem>>
    %92 = vector.extract_strided_slice %15 {offsets = [2, 0, 0], sizes = [1, 8, 8], strides = [1, 1, 1]} : vector<3x8x8xf32> to vector<1x8x8xf32>
    %93 = vector.shape_cast %92 : vector<1x8x8xf32> to vector<8x8xf32>
    %94 = vector.broadcast %91 : f32 to vector<8x8xf32>
    %95 = arith.mulf %94, %93 : vector<8x8xf32>
    %96 = arith.addf %87, %95 : vector<8x8xf32>
    %c0_27 = arith.constant 0 : index
    %c2 = arith.constant 2 : index
    %c0_28 = arith.constant 0 : index
    %c0_29 = arith.constant 0 : index
    %97 = vector.load %arg4[%c0_27, %c2, %c0_28, %c0_29] : memref<3x3x8x8xf32, #tpu.memory_space<vmem>>, vector<1x1x8x8xf32>
    %98 = vector.shape_cast %97 : vector<1x1x8x8xf32> to vector<8x8xf32>
    %99 = vector.shape_cast %96 : vector<8x8xf32> to vector<1x1x8x8xf32>
    tpu.vector_store %arg4[%c0_27, %c2, %c0_28, %c0_29], %99 {strides = array<i32>} : memref<3x3x8x8xf32, #tpu.memory_space<vmem>>, vector<1x1x8x8xf32>,
    %c3_i32_30 = arith.constant 3 : i32
    %100 = arith.muli %arg0, %c3_i32_30 : i32
    %c1_i32_31 = arith.constant 1 : i32
    %101 = arith.addi %100, %c1_i32_31 : i32
    %c2_i32_32 = arith.constant 2 : i32
    %c0_i32_33 = arith.constant 0 : i32
    %102 = arith.cmpi eq, %c2_i32_32, %c0_i32_33 : i32
    %c1_i32_34 = arith.constant 1 : i32
    %103 = arith.select %102, %c1_i32_34, %c2_i32_32 : i32
    %104 = arith.remsi %101, %103 : i32
    %c0_i32_35 = arith.constant 0 : i32
    %105 = arith.cmpi ne, %104, %c0_i32_35 : i32
    %c0_i32_36 = arith.constant 0 : i32
    %106 = arith.cmpi slt, %104, %c0_i32_36 : i32
    %c0_i32_37 = arith.constant 0 : i32
    %107 = arith.cmpi slt, %103, %c0_i32_37 : i32
    %108 = arith.xori %106, %107 : i1
    %109 = arith.andi %108, %105 : i1
    %110 = arith.addi %104, %103 : i32
    %111 = arith.select %109, %110, %104 : i32
    %112 = arith.index_cast %111 : i32 to index
    %c0_38 = arith.constant 0 : index
    %c0_39 = arith.constant 0 : index
    %c0_40 = arith.constant 0 : index
    %113 = vector.load %arg2[%112, %c0_38, %c0_39, %c0_40] : memref<2x3x8x8xf32, #tpu.memory_space<vmem>>, vector<1x3x8x8xf32>
    %114 = vector.shape_cast %113 : vector<1x3x8x8xf32> to vector<3x8x8xf32>
    %c9_i32 = arith.constant 9 : i32
    %115 = arith.addi %0, %c9_i32 : i32
    %116 = arith.index_cast %115 : i32 to index
    %117 = memref.load %arg1[%116] : memref<54xf32, #tpu.memory_space<smem>>
    %118 = vector.extract_strided_slice %114 {offsets = [0, 0, 0], sizes = [1, 8, 8], strides = [1, 1, 1]} : vector<3x8x8xf32> to vector<1x8x8xf32>
    %119 = vector.shape_cast %118 : vector<1x8x8xf32> to vector<8x8xf32>
    %120 = vector.broadcast %117 : f32 to vector<8x8xf32>
    %121 = arith.mulf %120, %119 : vector<8x8xf32>
    %c9_i32_41 = arith.constant 9 : i32
    %122 = arith.addi %0, %c9_i32_41 : i32
    %c1_i32_42 = arith.constant 1 : i32
    %123 = arith.addi %122, %c1_i32_42 : i32
    %124 = arith.index_cast %123 : i32 to index
    %125 = memref.load %arg1[%124] : memref<54xf32, #tpu.memory_space<smem>>
    %126 = vector.extract_strided_slice %114 {offsets = [1, 0, 0], sizes = [1, 8, 8], strides = [1, 1, 1]} : vector<3x8x8xf32> to vector<1x8x8xf32>
    %127 = vector.shape_cast %126 : vector<1x8x8xf32> to vector<8x8xf32>
    %128 = vector.broadcast %125 : f32 to vector<8x8xf32>
    %129 = arith.mulf %128, %127 : vector<8x8xf32>
    %130 = arith.addf %121, %129 : vector<8x8xf32>
    %c9_i32_43 = arith.constant 9 : i32
    %131 = arith.addi %0, %c9_i32_43 : i32
    %c2_i32_44 = arith.constant 2 : i32
    %132 = arith.addi %131, %c2_i32_44 : i32
    %133 = arith.index_cast %132 : i32 to index
    %134 = memref.load %arg1[%133] : memref<54xf32, #tpu.memory_space<smem>>
    %135 = vector.extract_strided_slice %114 {offsets = [2, 0, 0], sizes = [1, 8, 8], strides = [1, 1, 1]} : vector<3x8x8xf32> to vector<1x8x8xf32>
    %136 = vector.shape_cast %135 : vector<1x8x8xf32> to vector<8x8xf32>
    %137 = vector.broadcast %134 : f32 to vector<8x8xf32>
    %138 = arith.mulf %137, %136 : vector<8x8xf32>
    %139 = arith.addf %130, %138 : vector<8x8xf32>
    %c1_45 = arith.constant 1 : index
    %c0_46 = arith.constant 0 : index
    %c0_47 = arith.constant 0 : index
    %c0_48 = arith.constant 0 : index
    %140 = vector.load %arg4[%c1_45, %c0_46, %c0_47, %c0_48] : memref<3x3x8x8xf32, #tpu.memory_space<vmem>>, vector<1x1x8x8xf32>
    %141 = vector.shape_cast %140 : vector<1x1x8x8xf32> to vector<8x8xf32>
    %142 = vector.shape_cast %139 : vector<8x8xf32> to vector<1x1x8x8xf32>
    tpu.vector_store %arg4[%c1_45, %c0_46, %c0_47, %c0_48], %142 {strides = array<i32>} : memref<3x3x8x8xf32, #tpu.memory_space<vmem>>, vector<1x1x8x8xf32>,
    %c12_i32 = arith.constant 12 : i32
    %143 = arith.addi %0, %c12_i32 : i32
    %144 = arith.index_cast %143 : i32 to index
    %145 = memref.load %arg1[%144] : memref<54xf32, #tpu.memory_space<smem>>
    %146 = vector.extract_strided_slice %114 {offsets = [0, 0, 0], sizes = [1, 8, 8], strides = [1, 1, 1]} : vector<3x8x8xf32> to vector<1x8x8xf32>
    %147 = vector.shape_cast %146 : vector<1x8x8xf32> to vector<8x8xf32>
    %148 = vector.broadcast %145 : f32 to vector<8x8xf32>
    %149 = arith.mulf %148, %147 : vector<8x8xf32>
    %c12_i32_49 = arith.constant 12 : i32
    %150 = arith.addi %0, %c12_i32_49 : i32
    %c1_i32_50 = arith.constant 1 : i32
    %151 = arith.addi %150, %c1_i32_50 : i32
    %152 = arith.index_cast %151 : i32 to index
    %153 = memref.load %arg1[%152] : memref<54xf32, #tpu.memory_space<smem>>
    %154 = vector.extract_strided_slice %114 {offsets = [1, 0, 0], sizes = [1, 8, 8], strides = [1, 1, 1]} : vector<3x8x8xf32> to vector<1x8x8xf32>
    %155 = vector.shape_cast %154 : vector<1x8x8xf32> to vector<8x8xf32>
    %156 = vector.broadcast %153 : f32 to vector<8x8xf32>
    %157 = arith.mulf %156, %155 : vector<8x8xf32>
    %158 = arith.addf %149, %157 : vector<8x8xf32>
    %c12_i32_51 = arith.constant 12 : i32
    %159 = arith.addi %0, %c12_i32_51 : i32
    %c2_i32_52 = arith.constant 2 : i32
    %160 = arith.addi %159, %c2_i32_52 : i32
    %161 = arith.index_cast %160 : i32 to index
    %162 = memref.load %arg1[%161] : memref<54xf32, #tpu.memory_space<smem>>
    %163 = vector.extract_strided_slice %114 {offsets = [2, 0, 0], sizes = [1, 8, 8], strides = [1, 1, 1]} : vector<3x8x8xf32> to vector<1x8x8xf32>
    %164 = vector.shape_cast %163 : vector<1x8x8xf32> to vector<8x8xf32>
    %165 = vector.broadcast %162 : f32 to vector<8x8xf32>
    %166 = arith.mulf %165, %164 : vector<8x8xf32>
    %167 = arith.addf %158, %166 : vector<8x8xf32>
    %c1_53 = arith.constant 1 : index
    %c1_54 = arith.constant 1 : index
    %c0_55 = arith.constant 0 : index
    %c0_56 = arith.constant 0 : index
    %168 = vector.load %arg4[%c1_53, %c1_54, %c0_55, %c0_56] : memref<3x3x8x8xf32, #tpu.memory_space<vmem>>, vector<1x1x8x8xf32>
    %169 = vector.shape_cast %168 : vector<1x1x8x8xf32> to vector<8x8xf32>
    %170 = vector.shape_cast %167 : vector<8x8xf32> to vector<1x1x8x8xf32>
    tpu.vector_store %arg4[%c1_53, %c1_54, %c0_55, %c0_56], %170 {strides = array<i32>} : memref<3x3x8x8xf32, #tpu.memory_space<vmem>>, vector<1x1x8x8xf32>,
    %c15_i32 = arith.constant 15 : i32
    %171 = arith.addi %0, %c15_i32 : i32
    %172 = arith.index_cast %171 : i32 to index
    %173 = memref.load %arg1[%172] : memref<54xf32, #tpu.memory_space<smem>>
    %174 = vector.extract_strided_slice %114 {offsets = [0, 0, 0], sizes = [1, 8, 8], strides = [1, 1, 1]} : vector<3x8x8xf32> to vector<1x8x8xf32>
    %175 = vector.shape_cast %174 : vector<1x8x8xf32> to vector<8x8xf32>
    %176 = vector.broadcast %173 : f32 to vector<8x8xf32>
    %177 = arith.mulf %176, %175 : vector<8x8xf32>
    %c15_i32_57 = arith.constant 15 : i32
    %178 = arith.addi %0, %c15_i32_57 : i32
    %c1_i32_58 = arith.constant 1 : i32
    %179 = arith.addi %178, %c1_i32_58 : i32
    %180 = arith.index_cast %179 : i32 to index
    %181 = memref.load %arg1[%180] : memref<54xf32, #tpu.memory_space<smem>>
    %182 = vector.extract_strided_slice %114 {offsets = [1, 0, 0], sizes = [1, 8, 8], strides = [1, 1, 1]} : vector<3x8x8xf32> to vector<1x8x8xf32>
    %183 = vector.shape_cast %182 : vector<1x8x8xf32> to vector<8x8xf32>
    %184 = vector.broadcast %181 : f32 to vector<8x8xf32>
    %185 = arith.mulf %184, %183 : vector<8x8xf32>
    %186 = arith.addf %177, %185 : vector<8x8xf32>
    %c15_i32_59 = arith.constant 15 : i32
    %187 = arith.addi %0, %c15_i32_59 : i32
    %c2_i32_60 = arith.constant 2 : i32
    %188 = arith.addi %187, %c2_i32_60 : i32
    %189 = arith.index_cast %188 : i32 to index
    %190 = memref.load %arg1[%189] : memref<54xf32, #tpu.memory_space<smem>>
    %191 = vector.extract_strided_slice %114 {offsets = [2, 0, 0], sizes = [1, 8, 8], strides = [1, 1, 1]} : vector<3x8x8xf32> to vector<1x8x8xf32>
    %192 = vector.shape_cast %191 : vector<1x8x8xf32> to vector<8x8xf32>
    %193 = vector.broadcast %190 : f32 to vector<8x8xf32>
    %194 = arith.mulf %193, %192 : vector<8x8xf32>
    %195 = arith.addf %186, %194 : vector<8x8xf32>
    %c1_61 = arith.constant 1 : index
    %c2_62 = arith.constant 2 : index
    %c0_63 = arith.constant 0 : index
    %c0_64 = arith.constant 0 : index
    %196 = vector.load %arg4[%c1_61, %c2_62, %c0_63, %c0_64] : memref<3x3x8x8xf32, #tpu.memory_space<vmem>>, vector<1x1x8x8xf32>
    %197 = vector.shape_cast %196 : vector<1x1x8x8xf32> to vector<8x8xf32>
    %198 = vector.shape_cast %195 : vector<8x8xf32> to vector<1x1x8x8xf32>
    tpu.vector_store %arg4[%c1_61, %c2_62, %c0_63, %c0_64], %198 {strides = array<i32>} : memref<3x3x8x8xf32, #tpu.memory_space<vmem>>, vector<1x1x8x8xf32>,
    %c3_i32_65 = arith.constant 3 : i32
    %199 = arith.muli %arg0, %c3_i32_65 : i32
    %c2_i32_66 = arith.constant 2 : i32
    %200 = arith.addi %199, %c2_i32_66 : i32
    %c2_i32_67 = arith.constant 2 : i32
    %c0_i32_68 = arith.constant 0 : i32
    %201 = arith.cmpi eq, %c2_i32_67, %c0_i32_68 : i32
    %c1_i32_69 = arith.constant 1 : i32
    %202 = arith.select %201, %c1_i32_69, %c2_i32_67 : i32
    %203 = arith.remsi %200, %202 : i32
    %c0_i32_70 = arith.constant 0 : i32
    %204 = arith.cmpi ne, %203, %c0_i32_70 : i32
    %c0_i32_71 = arith.constant 0 : i32
    %205 = arith.cmpi slt, %203, %c0_i32_71 : i32
    %c0_i32_72 = arith.constant 0 : i32
    %206 = arith.cmpi slt, %202, %c0_i32_72 : i32
    %207 = arith.xori %205, %206 : i1
    %208 = arith.andi %207, %204 : i1
    %209 = arith.addi %203, %202 : i32
    %210 = arith.select %208, %209, %203 : i32
    %211 = arith.index_cast %210 : i32 to index
    %c0_73 = arith.constant 0 : index
    %c0_74 = arith.constant 0 : index
    %c0_75 = arith.constant 0 : index
    %212 = vector.load %arg2[%211, %c0_73, %c0_74, %c0_75] : memref<2x3x8x8xf32, #tpu.memory_space<vmem>>, vector<1x3x8x8xf32>
    %213 = vector.shape_cast %212 : vector<1x3x8x8xf32> to vector<3x8x8xf32>
    %c18_i32 = arith.constant 18 : i32
    %214 = arith.addi %0, %c18_i32 : i32
    %215 = arith.index_cast %214 : i32 to index
    %216 = memref.load %arg1[%215] : memref<54xf32, #tpu.memory_space<smem>>
    %217 = vector.extract_strided_slice %213 {offsets = [0, 0, 0], sizes = [1, 8, 8], strides = [1, 1, 1]} : vector<3x8x8xf32> to vector<1x8x8xf32>
    %218 = vector.shape_cast %217 : vector<1x8x8xf32> to vector<8x8xf32>
    %219 = vector.broadcast %216 : f32 to vector<8x8xf32>
    %220 = arith.mulf %219, %218 : vector<8x8xf32>
    %c18_i32_76 = arith.constant 18 : i32
    %221 = arith.addi %0, %c18_i32_76 : i32
    %c1_i32_77 = arith.constant 1 : i32
    %222 = arith.addi %221, %c1_i32_77 : i32
    %223 = arith.index_cast %222 : i32 to index
    %224 = memref.load %arg1[%223] : memref<54xf32, #tpu.memory_space<smem>>
    %225 = vector.extract_strided_slice %213 {offsets = [1, 0, 0], sizes = [1, 8, 8], strides = [1, 1, 1]} : vector<3x8x8xf32> to vector<1x8x8xf32>
    %226 = vector.shape_cast %225 : vector<1x8x8xf32> to vector<8x8xf32>
    %227 = vector.broadcast %224 : f32 to vector<8x8xf32>
    %228 = arith.mulf %227, %226 : vector<8x8xf32>
    %229 = arith.addf %220, %228 : vector<8x8xf32>
    %c18_i32_78 = arith.constant 18 : i32
    %230 = arith.addi %0, %c18_i32_78 : i32
    %c2_i32_79 = arith.constant 2 : i32
    %231 = arith.addi %230, %c2_i32_79 : i32
    %232 = arith.index_cast %231 : i32 to index
    %233 = memref.load %arg1[%232] : memref<54xf32, #tpu.memory_space<smem>>
    %234 = vector.extract_strided_slice %213 {offsets = [2, 0, 0], sizes = [1, 8, 8], strides = [1, 1, 1]} : vector<3x8x8xf32> to vector<1x8x8xf32>
    %235 = vector.shape_cast %234 : vector<1x8x8xf32> to vector<8x8xf32>
    %236 = vector.broadcast %233 : f32 to vector<8x8xf32>
    %237 = arith.mulf %236, %235 : vector<8x8xf32>
    %238 = arith.addf %229, %237 : vector<8x8xf32>
    %c2_80 = arith.constant 2 : index
    %c0_81 = arith.constant 0 : index
    %c0_82 = arith.constant 0 : index
    %c0_83 = arith.constant 0 : index
    %239 = vector.load %arg4[%c2_80, %c0_81, %c0_82, %c0_83] : memref<3x3x8x8xf32, #tpu.memory_space<vmem>>, vector<1x1x8x8xf32>
    %240 = vector.shape_cast %239 : vector<1x1x8x8xf32> to vector<8x8xf32>
    %241 = vector.shape_cast %238 : vector<8x8xf32> to vector<1x1x8x8xf32>
    tpu.vector_store %arg4[%c2_80, %c0_81, %c0_82, %c0_83], %241 {strides = array<i32>} : memref<3x3x8x8xf32, #tpu.memory_space<vmem>>, vector<1x1x8x8xf32>,
    %c21_i32 = arith.constant 21 : i32
    %242 = arith.addi %0, %c21_i32 : i32
    %243 = arith.index_cast %242 : i32 to index
    %244 = memref.load %arg1[%243] : memref<54xf32, #tpu.memory_space<smem>>
    %245 = vector.extract_strided_slice %213 {offsets = [0, 0, 0], sizes = [1, 8, 8], strides = [1, 1, 1]} : vector<3x8x8xf32> to vector<1x8x8xf32>
    %246 = vector.shape_cast %245 : vector<1x8x8xf32> to vector<8x8xf32>
    %247 = vector.broadcast %244 : f32 to vector<8x8xf32>
    %248 = arith.mulf %247, %246 : vector<8x8xf32>
    %c21_i32_84 = arith.constant 21 : i32
    %249 = arith.addi %0, %c21_i32_84 : i32
    %c1_i32_85 = arith.constant 1 : i32
    %250 = arith.addi %249, %c1_i32_85 : i32
    %251 = arith.index_cast %250 : i32 to index
    %252 = memref.load %arg1[%251] : memref<54xf32, #tpu.memory_space<smem>>
    %253 = vector.extract_strided_slice %213 {offsets = [1, 0, 0], sizes = [1, 8, 8], strides = [1, 1, 1]} : vector<3x8x8xf32> to vector<1x8x8xf32>
    %254 = vector.shape_cast %253 : vector<1x8x8xf32> to vector<8x8xf32>
    %255 = vector.broadcast %252 : f32 to vector<8x8xf32>
    %256 = arith.mulf %255, %254 : vector<8x8xf32>
    %257 = arith.addf %248, %256 : vector<8x8xf32>
    %c21_i32_86 = arith.constant 21 : i32
    %258 = arith.addi %0, %c21_i32_86 : i32
    %c2_i32_87 = arith.constant 2 : i32
    %259 = arith.addi %258, %c2_i32_87 : i32
    %260 = arith.index_cast %259 : i32 to index
    %261 = memref.load %arg1[%260] : memref<54xf32, #tpu.memory_space<smem>>
    %262 = vector.extract_strided_slice %213 {offsets = [2, 0, 0], sizes = [1, 8, 8], strides = [1, 1, 1]} : vector<3x8x8xf32> to vector<1x8x8xf32>
    %263 = vector.shape_cast %262 : vector<1x8x8xf32> to vector<8x8xf32>
    %264 = vector.broadcast %261 : f32 to vector<8x8xf32>
    %265 = arith.mulf %264, %263 : vector<8x8xf32>
    %266 = arith.addf %257, %265 : vector<8x8xf32>
    %c2_88 = arith.constant 2 : index
    %c1_89 = arith.constant 1 : index
    %c0_90 = arith.constant 0 : index
    %c0_91 = arith.constant 0 : index
    %267 = vector.load %arg4[%c2_88, %c1_89, %c0_90, %c0_91] : memref<3x3x8x8xf32, #tpu.memory_space<vmem>>, vector<1x1x8x8xf32>
    %268 = vector.shape_cast %267 : vector<1x1x8x8xf32> to vector<8x8xf32>
    %269 = vector.shape_cast %266 : vector<8x8xf32> to vector<1x1x8x8xf32>
    tpu.vector_store %arg4[%c2_88, %c1_89, %c0_90, %c0_91], %269 {strides = array<i32>} : memref<3x3x8x8xf32, #tpu.memory_space<vmem>>, vector<1x1x8x8xf32>,
    %c24_i32 = arith.constant 24 : i32
    %270 = arith.addi %0, %c24_i32 : i32
    %271 = arith.index_cast %270 : i32 to index
    %272 = memref.load %arg1[%271] : memref<54xf32, #tpu.memory_space<smem>>
    %273 = vector.extract_strided_slice %213 {offsets = [0, 0, 0], sizes = [1, 8, 8], strides = [1, 1, 1]} : vector<3x8x8xf32> to vector<1x8x8xf32>
    %274 = vector.shape_cast %273 : vector<1x8x8xf32> to vector<8x8xf32>
    %275 = vector.broadcast %272 : f32 to vector<8x8xf32>
    %276 = arith.mulf %275, %274 : vector<8x8xf32>
    %c24_i32_92 = arith.constant 24 : i32
    %277 = arith.addi %0, %c24_i32_92 : i32
    %c1_i32_93 = arith.constant 1 : i32
    %278 = arith.addi %277, %c1_i32_93 : i32
    %279 = arith.index_cast %278 : i32 to index
    %280 = memref.load %arg1[%279] : memref<54xf32, #tpu.memory_space<smem>>
    %281 = vector.extract_strided_slice %213 {offsets = [1, 0, 0], sizes = [1, 8, 8], strides = [1, 1, 1]} : vector<3x8x8xf32> to vector<1x8x8xf32>
    %282 = vector.shape_cast %281 : vector<1x8x8xf32> to vector<8x8xf32>
    %283 = vector.broadcast %280 : f32 to vector<8x8xf32>
    %284 = arith.mulf %283, %282 : vector<8x8xf32>
    %285 = arith.addf %276, %284 : vector<8x8xf32>
    %c24_i32_94 = arith.constant 24 : i32
    %286 = arith.addi %0, %c24_i32_94 : i32
    %c2_i32_95 = arith.constant 2 : i32
    %287 = arith.addi %286, %c2_i32_95 : i32
    %288 = arith.index_cast %287 : i32 to index
    %289 = memref.load %arg1[%288] : memref<54xf32, #tpu.memory_space<smem>>
    %290 = vector.extract_strided_slice %213 {offsets = [2, 0, 0], sizes = [1, 8, 8], strides = [1, 1, 1]} : vector<3x8x8xf32> to vector<1x8x8xf32>
    %291 = vector.shape_cast %290 : vector<1x8x8xf32> to vector<8x8xf32>
    %292 = vector.broadcast %289 : f32 to vector<8x8xf32>
    %293 = arith.mulf %292, %291 : vector<8x8xf32>
    %294 = arith.addf %285, %293 : vector<8x8xf32>
    %c2_96 = arith.constant 2 : index
    %c2_97 = arith.constant 2 : index
    %c0_98 = arith.constant 0 : index
    %c0_99 = arith.constant 0 : index
    %295 = vector.load %arg4[%c2_96, %c2_97, %c0_98, %c0_99] : memref<3x3x8x8xf32, #tpu.memory_space<vmem>>, vector<1x1x8x8xf32>
    %296 = vector.shape_cast %295 : vector<1x1x8x8xf32> to vector<8x8xf32>
    %297 = vector.shape_cast %294 : vector<8x8xf32> to vector<1x1x8x8xf32>
    tpu.vector_store %arg4[%c2_96, %c2_97, %c0_98, %c0_99], %297 {strides = array<i32>} : memref<3x3x8x8xf32, #tpu.memory_space<vmem>>, vector<1x1x8x8xf32>,
    %c0_100 = arith.constant 0 : index
    %c0_101 = arith.constant 0 : index
    %c0_102 = arith.constant 0 : index
    %c0_103 = arith.constant 0 : index
    %298 = vector.load %arg4[%c0_100, %c0_101, %c0_102, %c0_103] : memref<3x3x8x8xf32, #tpu.memory_space<vmem>>, vector<3x3x8x8xf32>
    %cst = arith.constant 0.000000e+00 : f32
    %299 = vector.broadcast %cst : f32 to vector<3x8x8xf32>
    %cst_104 = arith.constant dense<0xFF800000> : vector<3x8xf32>
    %300 = vector.multi_reduction <maximumf>, %299, %cst_104 [1] : vector<3x8x8xf32> to vector<3x8xf32>
    %301 = vector.shape_cast %300 : vector<3x8xf32> to vector<3x1x8xf32>
    %302 = vector.broadcast %301 : vector<3x1x8xf32> to vector<3x8x8xf32>
    %303 = arith.subf %299, %302 : vector<3x8x8xf32>
    %304 = math.exp %303 : vector<3x8x8xf32>
    %cst_105 = arith.constant dense<0.000000e+00> : vector<3x8xf32>
    %305 = vector.multi_reduction <add>, %304, %cst_105 [1] : vector<3x8x8xf32> to vector<3x8xf32>
    %306 = vector.shape_cast %305 : vector<3x8xf32> to vector<3x1x8xf32>
    %307 = tpu.reciprocal %306 {approx = true} : vector<3x1x8xf32> -> vector<3x1x8xf32>
    %308 = arith.mulf %306, %307 : vector<3x1x8xf32>
    %cst_106 = arith.constant 2.000000e+00 : f32
    %309 = vector.broadcast %cst_106 : f32 to vector<3x1x8xf32>
    %310 = arith.subf %309, %308 : vector<3x1x8xf32>
    %311 = arith.mulf %307, %310 : vector<3x1x8xf32>
    %312 = vector.broadcast %311 : vector<3x1x8xf32> to vector<3x8x8xf32>
    %313 = arith.mulf %304, %312 : vector<3x8x8xf32>
    %cst_107 = arith.constant dense<0.000000e+00> : vector<8x8xf32>
    %314 = vector.multi_reduction <add>, %313, %cst_107 [0] : vector<3x8x8xf32> to vector<8x8xf32>
    %315 = vector.shape_cast %314 : vector<8x8xf32> to vector<1x8x8xf32>
    %cst_108 = arith.constant 1.000000e-10 : f32
    %316 = vector.broadcast %cst_108 : f32 to vector<1x8x8xf32>
    %317 = arith.addf %315, %316 : vector<1x8x8xf32>
    %318 = tpu.reciprocal %317 {approx = true} : vector<1x8x8xf32> -> vector<1x8x8xf32>
    %319 = arith.mulf %317, %318 : vector<1x8x8xf32>
    %cst_109 = arith.constant 2.000000e+00 : f32
    %320 = vector.broadcast %cst_109 : f32 to vector<1x8x8xf32>
    %321 = arith.subf %320, %319 : vector<1x8x8xf32>
    %322 = arith.mulf %318, %321 : vector<1x8x8xf32>
    %323 = vector.broadcast %322 : vector<1x8x8xf32> to vector<3x8x8xf32>
    %324 = arith.mulf %313, %323 : vector<3x8x8xf32>
    %325 = vector.shape_cast %324 : vector<3x8x8xf32> to vector<3x1x8x8xf32>
    %326 = vector.broadcast %325 : vector<3x1x8x8xf32> to vector<3x3x8x8xf32>
    %327 = arith.mulf %326, %298 : vector<3x3x8x8xf32>
    %cst_110 = arith.constant dense<0.000000e+00> : vector<3x3x8xf32>
    %328 = vector.multi_reduction <add>, %327, %cst_110 [2] : vector<3x3x8x8xf32> to vector<3x3x8xf32>
    %329 = vector.shape_cast %328 : vector<3x3x8xf32> to vector<3x3x1x8xf32>
    %330 = arith.mulf %329, %329 : vector<3x3x1x8xf32>
    %cst_111 = arith.constant dense<0.000000e+00> : vector<3x1x8xf32>
    %331 = vector.multi_reduction <add>, %330, %cst_111 [1] : vector<3x3x1x8xf32> to vector<3x1x8xf32>
    %332 = vector.shape_cast %331 : vector<3x1x8xf32> to vector<3x1x1x8xf32>
    %cst_112 = arith.constant 9.99999993E-9 : f32
    %333 = vector.broadcast %cst_112 : f32 to vector<3x1x1x8xf32>
    %334 = arith.addf %332, %333 : vector<3x1x1x8xf32>
    %335 = math.rsqrt %334 : vector<3x1x1x8xf32>
    %336 = arith.mulf %332, %335 : vector<3x1x1x8xf32>
    %cst_113 = arith.constant 1.000000e+00 : f32
    %337 = vector.broadcast %cst_113 : f32 to vector<3x1x1x8xf32>
    %338 = arith.addf %337, %332 : vector<3x1x1x8xf32>
    %339 = tpu.reciprocal %338 {approx = true} : vector<3x1x1x8xf32> -> vector<3x1x1x8xf32>
    %340 = arith.mulf %338, %339 : vector<3x1x1x8xf32>
    %cst_114 = arith.constant 2.000000e+00 : f32
    %341 = vector.broadcast %cst_114 : f32 to vector<3x1x1x8xf32>
    %342 = arith.subf %341, %340 : vector<3x1x1x8xf32>
    %343 = arith.mulf %339, %342 : vector<3x1x1x8xf32>
    %344 = arith.mulf %336, %343 : vector<3x1x1x8xf32>
    %345 = vector.broadcast %344 : vector<3x1x1x8xf32> to vector<3x3x1x8xf32>
    %346 = arith.mulf %329, %345 : vector<3x3x1x8xf32>
    %347 = vector.broadcast %346 : vector<3x3x1x8xf32> to vector<3x3x8x8xf32>
    %348 = arith.mulf %347, %298 : vector<3x3x8x8xf32>
    %cst_115 = arith.constant dense<0.000000e+00> : vector<3x8x8xf32>
    %349 = vector.multi_reduction <add>, %348, %cst_115 [1] : vector<3x3x8x8xf32> to vector<3x8x8xf32>
    %350 = arith.addf %299, %349 : vector<3x8x8xf32>
    %cst_116 = arith.constant dense<0xFF800000> : vector<3x8xf32>
    %351 = vector.multi_reduction <maximumf>, %350, %cst_116 [1] : vector<3x8x8xf32> to vector<3x8xf32>
    %352 = vector.shape_cast %351 : vector<3x8xf32> to vector<3x1x8xf32>
    %353 = vector.broadcast %352 : vector<3x1x8xf32> to vector<3x8x8xf32>
    %354 = arith.subf %350, %353 : vector<3x8x8xf32>
    %355 = math.exp %354 : vector<3x8x8xf32>
    %cst_117 = arith.constant dense<0.000000e+00> : vector<3x8xf32>
    %356 = vector.multi_reduction <add>, %355, %cst_117 [1] : vector<3x8x8xf32> to vector<3x8xf32>
    %357 = vector.shape_cast %356 : vector<3x8xf32> to vector<3x1x8xf32>
    %358 = tpu.reciprocal %357 {approx = true} : vector<3x1x8xf32> -> vector<3x1x8xf32>
    %359 = arith.mulf %357, %358 : vector<3x1x8xf32>
    %cst_118 = arith.constant 2.000000e+00 : f32
    %360 = vector.broadcast %cst_118 : f32 to vector<3x1x8xf32>
    %361 = arith.subf %360, %359 : vector<3x1x8xf32>
    %362 = arith.mulf %358, %361 : vector<3x1x8xf32>
    %363 = vector.broadcast %362 : vector<3x1x8xf32> to vector<3x8x8xf32>
    %364 = arith.mulf %355, %363 : vector<3x8x8xf32>
    %cst_119 = arith.constant dense<0.000000e+00> : vector<8x8xf32>
    %365 = vector.multi_reduction <add>, %364, %cst_119 [0] : vector<3x8x8xf32> to vector<8x8xf32>
    %366 = vector.shape_cast %365 : vector<8x8xf32> to vector<1x8x8xf32>
    %cst_120 = arith.constant 1.000000e-10 : f32
    %367 = vector.broadcast %cst_120 : f32 to vector<1x8x8xf32>
    %368 = arith.addf %366, %367 : vector<1x8x8xf32>
    %369 = tpu.reciprocal %368 {approx = true} : vector<1x8x8xf32> -> vector<1x8x8xf32>
    %370 = arith.mulf %368, %369 : vector<1x8x8xf32>
    %cst_121 = arith.constant 2.000000e+00 : f32
    %371 = vector.broadcast %cst_121 : f32 to vector<1x8x8xf32>
    %372 = arith.subf %371, %370 : vector<1x8x8xf32>
    %373 = arith.mulf %369, %372 : vector<1x8x8xf32>
    %374 = vector.broadcast %373 : vector<1x8x8xf32> to vector<3x8x8xf32>
    %375 = arith.mulf %364, %374 : vector<3x8x8xf32>
    %376 = vector.shape_cast %375 : vector<3x8x8xf32> to vector<3x1x8x8xf32>
    %377 = vector.broadcast %376 : vector<3x1x8x8xf32> to vector<3x3x8x8xf32>
    %378 = arith.mulf %377, %298 : vector<3x3x8x8xf32>
    %cst_122 = arith.constant dense<0.000000e+00> : vector<3x3x8xf32>
    %379 = vector.multi_reduction <add>, %378, %cst_122 [2] : vector<3x3x8x8xf32> to vector<3x3x8xf32>
    %380 = vector.shape_cast %379 : vector<3x3x8xf32> to vector<3x3x1x8xf32>
    %381 = arith.mulf %380, %380 : vector<3x3x1x8xf32>
    %cst_123 = arith.constant dense<0.000000e+00> : vector<3x1x8xf32>
    %382 = vector.multi_reduction <add>, %381, %cst_123 [1] : vector<3x3x1x8xf32> to vector<3x1x8xf32>
    %383 = vector.shape_cast %382 : vector<3x1x8xf32> to vector<3x1x1x8xf32>
    %cst_124 = arith.constant 9.99999993E-9 : f32
    %384 = vector.broadcast %cst_124 : f32 to vector<3x1x1x8xf32>
    %385 = arith.addf %383, %384 : vector<3x1x1x8xf32>
    %386 = math.rsqrt %385 : vector<3x1x1x8xf32>
    %387 = arith.mulf %383, %386 : vector<3x1x1x8xf32>
    %cst_125 = arith.constant 1.000000e+00 : f32
    %388 = vector.broadcast %cst_125 : f32 to vector<3x1x1x8xf32>
    %389 = arith.addf %388, %383 : vector<3x1x1x8xf32>
    %390 = tpu.reciprocal %389 {approx = true} : vector<3x1x1x8xf32> -> vector<3x1x1x8xf32>
    %391 = arith.mulf %389, %390 : vector<3x1x1x8xf32>
    %cst_126 = arith.constant 2.000000e+00 : f32
    %392 = vector.broadcast %cst_126 : f32 to vector<3x1x1x8xf32>
    %393 = arith.subf %392, %391 : vector<3x1x1x8xf32>
    %394 = arith.mulf %390, %393 : vector<3x1x1x8xf32>
    %395 = arith.mulf %387, %394 : vector<3x1x1x8xf32>
    %396 = vector.broadcast %395 : vector<3x1x1x8xf32> to vector<3x3x1x8xf32>
    %397 = arith.mulf %380, %396 : vector<3x3x1x8xf32>
    %398 = vector.broadcast %397 : vector<3x3x1x8xf32> to vector<3x3x8x8xf32>
    %399 = arith.mulf %398, %298 : vector<3x3x8x8xf32>
    %cst_127 = arith.constant dense<0.000000e+00> : vector<3x8x8xf32>
    %400 = vector.multi_reduction <add>, %399, %cst_127 [1] : vector<3x3x8x8xf32> to vector<3x8x8xf32>
    %401 = arith.addf %350, %400 : vector<3x8x8xf32>
    %cst_128 = arith.constant dense<0xFF800000> : vector<3x8xf32>
    %402 = vector.multi_reduction <maximumf>, %401, %cst_128 [1] : vector<3x8x8xf32> to vector<3x8xf32>
    %403 = vector.shape_cast %402 : vector<3x8xf32> to vector<3x1x8xf32>
    %404 = vector.broadcast %403 : vector<3x1x8xf32> to vector<3x8x8xf32>
    %405 = arith.subf %401, %404 : vector<3x8x8xf32>
    %406 = math.exp %405 : vector<3x8x8xf32>
    %cst_129 = arith.constant dense<0.000000e+00> : vector<3x8xf32>
    %407 = vector.multi_reduction <add>, %406, %cst_129 [1] : vector<3x8x8xf32> to vector<3x8xf32>
    %408 = vector.shape_cast %407 : vector<3x8xf32> to vector<3x1x8xf32>
    %409 = tpu.reciprocal %408 {approx = true} : vector<3x1x8xf32> -> vector<3x1x8xf32>
    %410 = arith.mulf %408, %409 : vector<3x1x8xf32>
    %cst_130 = arith.constant 2.000000e+00 : f32
    %411 = vector.broadcast %cst_130 : f32 to vector<3x1x8xf32>
    %412 = arith.subf %411, %410 : vector<3x1x8xf32>
    %413 = arith.mulf %409, %412 : vector<3x1x8xf32>
    %414 = vector.broadcast %413 : vector<3x1x8xf32> to vector<3x8x8xf32>
    %415 = arith.mulf %406, %414 : vector<3x8x8xf32>
    %cst_131 = arith.constant dense<0.000000e+00> : vector<8x8xf32>
    %416 = vector.multi_reduction <add>, %415, %cst_131 [0] : vector<3x8x8xf32> to vector<8x8xf32>
    %417 = vector.shape_cast %416 : vector<8x8xf32> to vector<1x8x8xf32>
    %cst_132 = arith.constant 1.000000e-10 : f32
    %418 = vector.broadcast %cst_132 : f32 to vector<1x8x8xf32>
    %419 = arith.addf %417, %418 : vector<1x8x8xf32>
    %420 = tpu.reciprocal %419 {approx = true} : vector<1x8x8xf32> -> vector<1x8x8xf32>
    %421 = arith.mulf %419, %420 : vector<1x8x8xf32>
    %cst_133 = arith.constant 2.000000e+00 : f32
    %422 = vector.broadcast %cst_133 : f32 to vector<1x8x8xf32>
    %423 = arith.subf %422, %421 : vector<1x8x8xf32>
    %424 = arith.mulf %420, %423 : vector<1x8x8xf32>
    %425 = vector.broadcast %424 : vector<1x8x8xf32> to vector<3x8x8xf32>
    %426 = arith.mulf %415, %425 : vector<3x8x8xf32>
    %427 = vector.shape_cast %426 : vector<3x8x8xf32> to vector<3x1x8x8xf32>
    %428 = vector.broadcast %427 : vector<3x1x8x8xf32> to vector<3x3x8x8xf32>
    %429 = arith.mulf %428, %298 : vector<3x3x8x8xf32>
    %cst_134 = arith.constant dense<0.000000e+00> : vector<3x3x8xf32>
    %430 = vector.multi_reduction <add>, %429, %cst_134 [2] : vector<3x3x8x8xf32> to vector<3x3x8xf32>
    %431 = vector.shape_cast %430 : vector<3x3x8xf32> to vector<3x3x1x8xf32>
    %432 = arith.mulf %431, %431 : vector<3x3x1x8xf32>
    %cst_135 = arith.constant dense<0.000000e+00> : vector<3x1x8xf32>
    %433 = vector.multi_reduction <add>, %432, %cst_135 [1] : vector<3x3x1x8xf32> to vector<3x1x8xf32>
    %434 = vector.shape_cast %433 : vector<3x1x8xf32> to vector<3x1x1x8xf32>
    %cst_136 = arith.constant 9.99999993E-9 : f32
    %435 = vector.broadcast %cst_136 : f32 to vector<3x1x1x8xf32>
    %436 = arith.addf %434, %435 : vector<3x1x1x8xf32>
    %437 = math.rsqrt %436 : vector<3x1x1x8xf32>
    %438 = arith.mulf %434, %437 : vector<3x1x1x8xf32>
    %cst_137 = arith.constant 1.000000e+00 : f32
    %439 = vector.broadcast %cst_137 : f32 to vector<3x1x1x8xf32>
    %440 = arith.addf %439, %434 : vector<3x1x1x8xf32>
    %441 = tpu.reciprocal %440 {approx = true} : vector<3x1x1x8xf32> -> vector<3x1x1x8xf32>
    %442 = arith.mulf %440, %441 : vector<3x1x1x8xf32>
    %cst_138 = arith.constant 2.000000e+00 : f32
    %443 = vector.broadcast %cst_138 : f32 to vector<3x1x1x8xf32>
    %444 = arith.subf %443, %442 : vector<3x1x1x8xf32>
    %445 = arith.mulf %441, %444 : vector<3x1x1x8xf32>
    %446 = arith.mulf %438, %445 : vector<3x1x1x8xf32>
    %447 = vector.broadcast %446 : vector<3x1x1x8xf32> to vector<3x3x1x8xf32>
    %448 = arith.mulf %431, %447 : vector<3x3x1x8xf32>
    %449 = vector.shape_cast %448 : vector<3x3x1x8xf32> to vector<3x3x8xf32>
    %c0_139 = arith.constant 0 : index
    %c0_140 = arith.constant 0 : index
    %c0_141 = arith.constant 0 : index
    %c0_142 = arith.constant 0 : index
    %450 = vector.load %arg3[%c0_139, %c0_140, %c0_141, %c0_142] : memref<1x3x3x8xf32, #tpu.memory_space<vmem>>, vector<1x3x3x8xf32>
    %451 = vector.shape_cast %450 : vector<1x3x3x8xf32> to vector<3x3x8xf32>
    %452 = vector.shape_cast %449 : vector<3x3x8xf32> to vector<1x3x3x8xf32>
    tpu.vector_store %arg3[%c0_139, %c0_140, %c0_141, %c0_142], %452 {strides = array<i32>} : memref<1x3x3x8xf32, #tpu.memory_space<vmem>>, vector<1x3x3x8xf32>,
    return
  }
  func.func @transform_0(%arg0: i32) -> i32 {
    %c0_i32 = arith.constant 0 : i32
    %c0_i32_0 = arith.constant 0 : i32
    return %c0_i32 : i32
  }
  func.func @transform_1(%arg0: i32) -> (i32, i32, i32, i32) {
    %c0_i32 = arith.constant 0 : i32
    %c0_i32_0 = arith.constant 0 : i32
    %c0_i32_1 = arith.constant 0 : i32
    %c0_i32_2 = arith.constant 0 : i32
    %c0_i32_3 = arith.constant 0 : i32
    return %c0_i32, %c0_i32_0, %c0_i32_1, %c0_i32_2 : i32, i32, i32, i32
  }
  func.func @transform_2(%arg0: i32) -> (i32, i32, i32, i32) {
    %c0_i32 = arith.constant 0 : i32
    %c0_i32_0 = arith.constant 0 : i32
    %c0_i32_1 = arith.constant 0 : i32
    %c0_i32_2 = arith.constant 0 : i32
    return %arg0, %c0_i32, %c0_i32_0, %c0_i32_1 : i32, i32, i32, i32
  }
}

</mosaic_0001>

<llo_original>
// kernel: tpu_custom_call.1
$region0: #{tpu_custom_call.1}
  #allocation0 [shape = 'u32[]', space=smem, size = 0x4, offset = 0x4, fixed_abs, tag = 'smem constant byte address 0x4 - core index']
  #allocation1 [shape = 'u32[144,128]{1,0:T(1,128)}', space=vmem, size = 0x12000, scoped, tag = 'internal scratch']
  #allocation2 [shape = 'f32[3,3,8,8]{3,2,1,0:T(8,128)}', space=vmem, size = 0x9000, scoped, tag = 'scratch operand']
  %s0 = inlined_call_operand.hbm [shape: f32[54], index: 0, kind: input, shape index: {}]
  %s1 = inlined_call_operand.hbm [shape: f32[2,3,8,8], index: 1, kind: input, shape index: {}]
  %s2 = inlined_call_operand.vmem [shape: f32[2,3,3,8], index: 2, kind: output, shape index: {}]
  %s3 = sld [smem:[#allocation0]]
  $region49: #{tpu_custom_call.1} parent=0
    _
  %s5 = ssub.s32 1, %s3
  %s6 = scalar_select 0, %s5, %s3
  $region1: #{tpu_custom_call.1} parent=0
    #allocation3 [shape = 'u8[512]{0}', space=smem, size = 0x200, scoped, tag = 'input window, operand 0, single buffered']
    #allocation4 [shape = 's32[2]{0}', space=sflag, size = 0x8, scoped, tag = 'scoped memory for tpu_custom_call.1']
    #allocation5 [shape = 's32[2]{0}', space=sflag, size = 0x8, scoped, tag = 'scoped memory for tpu_custom_call.1']
    #allocation6 [shape = 'u8[24576]{0}', space=vmem, size = 0x6000, scoped, tag = 'input window, operand 1, single buffered']
    %7 = vsyncpa [#allocation5], 0
    %8 = vsyncpa [#allocation4], 0
    loop: start=0, step=1, limit=4
    $region2: #{tpu_custom_call.1} parent=1 // loop_pre_header
      _
    $region3: #{tpu_custom_call.1} parent=1 // loop_header
      %s10 = sphi 0, %s14
      %p11 = scmp.ge.s32.totalorder %s10, 4
      %s18 = sphi 0, %s18
      %s20 = sphi 0, %s18
      %s21 = sphi 0, %s20
      %s35 = sphi 0, %s21
      %s39 = sphi 0, %s39
      %s41 = sphi 0, %s39
      %s42 = sphi 0, %s41
      %s56 = sphi 0, %s42
      %s62 = sphi 0, %s64
      %s65 = sphi 0, %s62
      %s66 = sphi 0, %s65
      %s82 = sphi 0, %s66
    $region4: #{tpu_custom_call.1} parent=1 // loop_header_branch
      %13 = sbr.rel (%p11) target = $region8
    $region5: #{tpu_custom_call.1} parent=1 // loop_body
      %s15 = ssub.s32 %s10, 1
      %s16 = ssub.s32 %s10, 2
      %s17 = sadd.s32 %s10, 1
      %s19 = sadd.s32 %s18, 1
      %p22 = scmp.eq.s32.totalorder %s10, 1
      %p23 = scmp.ne.s32.totalorder %s18, %s20
      %p24 = scmp.eq.s32.totalorder %s10, 0
      %p25 = por %p23, %p24
      %p26 = scmp.ne.s32.totalorder %s18, %s20
      %p27 = scmp.eq.s32.totalorder %s15, 1
      %p28 = por %p26, %p27
      %p29 = scmp.ne.s32.totalorder %s20, %s21
      %p30 = scmp.eq.s32.totalorder %s15, 0
      %p31 = por %p29, %p30
      %p32 = scmp.ne.s32.totalorder %s20, %s21
      %p33 = scmp.eq.s32.totalorder %s16, 1
      %p34 = por %p32, %p33
      %p36 = scmp.ne.s32.totalorder %s21, %s35
      %p37 = scmp.eq.s32.totalorder %s16, 0
      %p38 = por %p36, %p37
      %s40 = sadd.s32 %s39, 1
      %p43 = scmp.eq.s32.totalorder %s10, 1
      %p44 = scmp.ne.s32.totalorder %s39, %s41
      %p45 = scmp.eq.s32.totalorder %s10, 0
      %p46 = por %p44, %p45
      %p47 = scmp.ne.s32.totalorder %s39, %s41
      %p48 = scmp.eq.s32.totalorder %s15, 1
      %p49 = por %p47, %p48
      %p50 = scmp.ne.s32.totalorder %s41, %s42
      %p51 = scmp.eq.s32.totalorder %s15, 0
      %p52 = por %p50, %p51
      %p53 = scmp.ne.s32.totalorder %s41, %s42
      %p54 = scmp.eq.s32.totalorder %s16, 1
      %p55 = por %p53, %p54
      %p57 = scmp.ne.s32.totalorder %s42, %s56
      %p58 = scmp.eq.s32.totalorder %s16, 0
      %p59 = por %p57, %p58
      %s60 = ssub.s32 %s10, %s17
      %p61 = scmp.eq.s32.totalorder %s60, 0
      %s63 = sadd.s32 %s62, 1
      %s64 = scalar_select %p61, %s62, %s63
      %p67 = pneg %p61
      %p68 = scmp.eq.s32.totalorder %s10, 1
      %p69 = por %p67, %p68
      %p70 = scmp.ne.s32.totalorder %s62, %s65
      %p71 = scmp.eq.s32.totalorder %s10, 0
      %p72 = por %p70, %p71
      %p73 = scmp.ne.s32.totalorder %s62, %s65
      %p74 = scmp.eq.s32.totalorder %s15, 1
      %p75 = por %p73, %p74
      %p76 = scmp.ne.s32.totalorder %s65, %s66
      %p77 = scmp.eq.s32.totalorder %s15, 0
      %p78 = por %p76, %p77
      %p79 = scmp.ne.s32.totalorder %s65, %s66
      %p80 = scmp.eq.s32.totalorder %s16, 1
      %p81 = por %p79, %p80
      %p83 = scmp.ne.s32.totalorder %s66, %s82
      %p84 = scmp.eq.s32.totalorder %s16, 0
      %p85 = por %p83, %p84
      %p86 = scmp.le.s32.totalorder 1, %s10
      %p87 = scmp.lt.s32.totalorder %s10, 3
      %p88 = pnand %p86, %p87
      %p89 = pneg %p88
      // Predicated region
      $region9: #{tpu_custom_call.1} parent=5 // pred_check
        _
      $region10: #{tpu_custom_call.1} parent=5 // pred_check_branch
        %91 = sbr.rel (%p88) target = $region12
      $region11: #{tpu_custom_call.1} parent=5 // pred_region
        %s92 = ssub.s32 %s10, 1
        // Predicated region
        $region13: #{tpu_custom_call.1} parent=11 // pred_check
          %p93 = pneg %p31
        $region14: #{tpu_custom_call.1} parent=11 // pred_check_branch
          %95 = sbr.rel (%p93) target = $region16
        $region15: #{tpu_custom_call.1} parent=11 // pred_region
          %s97 = ssub.s32 16, 16
          %98 = vsyncadd [#allocation5], %s97
          %101 = dma.hbm_to_smem %s0, 16, [#allocation3], [#allocation5]
        $region16: #{tpu_custom_call.1} parent=11 // pred_fallthru
          _
        // Predicated region
        $region17: #{tpu_custom_call.1} parent=11 // pred_check
          %p102 = pneg %p52
        $region18: #{tpu_custom_call.1} parent=11 // pred_check_branch
          %104 = sbr.rel (%p102) target = $region20
        $region19: #{tpu_custom_call.1} parent=11 // pred_region
          %s106 = ssub.s32 768, 768
          %107 = vsyncadd [#allocation4], %s106
          %s108 = sshll.u32 [#allocation6], 4
          %s109 = int_to_ptr.vmem [resolvable:$true] %s108
          %114 = dma.hbm_to_vmem [thread:$0]  %s1, 768, %s109, [#allocation4], 128, 128, 8
        $region20: #{tpu_custom_call.1} parent=11 // pred_fallthru
          _
      $region12: #{tpu_custom_call.1} parent=5 // pred_fallthru
        _
      %p115 = scmp.lt.s32.totalorder %s10, 2
      // Predicated region
      $region21: #{tpu_custom_call.1} parent=5 // pred_check
        %p116 = pneg %p115
      $region22: #{tpu_custom_call.1} parent=5 // pred_check_branch
        %118 = sbr.rel (%p116) target = $region24
      $region23: #{tpu_custom_call.1} parent=5 // pred_region
        _
      $region24: #{tpu_custom_call.1} parent=5 // pred_fallthru
        _
      %p119 = scmp.le.s32.totalorder 1, %s10
      %p120 = scmp.lt.s32.totalorder %s10, 3
      %p121 = pnand %p119, %p120
      %p122 = pneg %p121
      // Predicated region
      $region25: #{tpu_custom_call.1} parent=5 // pred_check
        _
      $region26: #{tpu_custom_call.1} parent=5 // pred_check_branch
        %124 = sbr.rel (%p121) target = $region28
      $region27: #{tpu_custom_call.1} parent=5 // pred_region
        %s125 = ssub.s32 %s10, 1
        // Predicated region
        $region29: #{tpu_custom_call.1} parent=27 // pred_check
          %p126 = pneg %p31
        $region30: #{tpu_custom_call.1} parent=27 // pred_check_branch
          %128 = sbr.rel (%p126) target = $region32
        $region31: #{tpu_custom_call.1} parent=27 // pred_region
          %129 = dma.done [#allocation5], 16
        $region32: #{tpu_custom_call.1} parent=27 // pred_fallthru
          _
        // Predicated region
        $region33: #{tpu_custom_call.1} parent=27 // pred_check
          %p130 = pneg %p52
        $region34: #{tpu_custom_call.1} parent=27 // pred_check_branch
          %132 = sbr.rel (%p130) target = $region36
        $region35: #{tpu_custom_call.1} parent=27 // pred_region
          %133 = dma.done [#allocation4], 768
        $region36: #{tpu_custom_call.1} parent=27 // pred_fallthru
          _
        %134 = sfence
        %p135 = pneg %p31
        %p136 = pneg %p28
        %p137 = pneg %p52
        %p138 = pneg %p49
        %p139 = pneg %p78
        %p140 = pneg %p75
        %p141 = scmp.lt.s32.totalorder %s15, 1
        %s142 = scalar_select %p141, %s15, 1
        %s143 = smul.addr %s142, 3
        %s144 = smul.addr %s143, 4
        %s145 = scalar_lea.vmem %s2, %s144
        %p146 = scmp.lt.s32.totalorder %s15, 1
        %s147 = scalar_select %p146, %s15, 1
        %s148 = smul.addr %s147, 3
        %s149 = smul.addr %s148, 4
        %s150 = scalar_lea.vmem %s2, %s149
        %s151 = smul.u32 %s15, 27
        %s152 = smul.u32 %s15, 3
        %p153 = scmp.lt.s32.totalorder %s152, 0
        %s154 = ssub.s32 0, %s152
        %s155 = scalar_select %p153, %s154, %s152
        %s156 = sand.u32 %s155, 1
        %s157 = ssub.s32 0, %s156
        %s158 = scalar_select %p153, %s157, %s156
        %p159 = scmp.ne.s32.totalorder %s158, 0
        %p160 = scmp.lt.s32.totalorder %s158, 0
        %p161 = pnand %p160, %p159
        %p162 = pneg %p161
        %s163 = sadd.s32 %s158, 2
        %s164 = scalar_select %p162, %s163, %s158
        %s165 = smul.u32 %s164, 24
        %s166 = scalar_lea.vmem [#allocation6], %s165
        %v167 = vld [vmem:[%s166] sm:$0xff]
        %v168 = vld [vmem:[%s166 + $0x8] sm:$0xff]
        %v169 = vld [vmem:[%s166 + $0x10] sm:$0xff]
        %s170 = sld [smem:[#allocation3 + %s151]]
        %v171 = vstv %s170
        %v172 = vmul.f32 %v171, %v167
        %s173 = sadd.s32 %s151, 1
        %s174 = sld [smem:[#allocation3 + %s173]]
        %v175 = vstv %s174
        %v176 = vmul.f32 %v175, %v168
        %v177 = vadd.f32 %v172, %v176
        %s178 = sadd.s32 %s151, 2
        %s179 = sld [smem:[#allocation3 + %s178]]
        %v180 = vstv %s179
        %v181 = vmul.f32 %v180, %v169
        %v182 = vadd.f32 %v177, %v181
        %vm183 = vcmask 64512
        %184 = vst.msk [vmem:[#allocation2] sm:$0xff] %vm183, %v182
        %s185 = sadd.s32 %s151, 3
        %s186 = sld [smem:[#allocation3 + %s185]]
        %v187 = vstv %s186
        %v188 = vmul.f32 %v187, %v167
        %s189 = sadd.s32 %s151, 4
        %s190 = sld [smem:[#allocation3 + %s189]]
        %v191 = vstv %s190
        %v192 = vmul.f32 %v191, %v168
        %v193 = vadd.f32 %v188, %v192
        %s194 = sadd.s32 %s151, 5
        %s195 = sld [smem:[#allocation3 + %s194]]
        %v196 = vstv %s195
        %v197 = vmul.f32 %v196, %v169
        %v198 = vadd.f32 %v193, %v197
        %s199 = scalar_lea.vmem [#allocation2], 8
        %200 = vst.msk [vmem:[%s199] sm:$0xff] %vm183, %v198
        %s201 = sadd.s32 %s151, 6
        %s202 = sld [smem:[#allocation3 + %s201]]
        %v203 = vstv %s202
        %v204 = vmul.f32 %v203, %v167
        %s205 = sadd.s32 %s151, 7
        %s206 = sld [smem:[#allocation3 + %s205]]
        %v207 = vstv %s206
        %v208 = vmul.f32 %v207, %v168
        %v209 = vadd.f32 %v204, %v208
        %s210 = sadd.s32 %s151, 8
        %s211 = sld [smem:[#allocation3 + %s210]]
        %v212 = vstv %s211
        %v213 = vmul.f32 %v212, %v169
        %v214 = vadd.f32 %v209, %v213
        %s215 = scalar_lea.vmem [#allocation2], 16
        %216 = vst.msk [vmem:[%s215] sm:$0xff] %vm183, %v214
        %s217 = sadd.s32 %s152, 1
        %p218 = scmp.lt.s32.totalorder %s217, 0
        %s219 = ssub.s32 0, %s217
        %s220 = scalar_select %p218, %s219, %s217
        %s221 = sand.u32 %s220, 1
        %s222 = ssub.s32 0, %s221
        %s223 = scalar_select %p218, %s222, %s221
        %p224 = scmp.ne.s32.totalorder %s223, 0
        %p225 = scmp.lt.s32.totalorder %s223, 0
        %p226 = pnand %p225, %p224
        %p227 = pneg %p226
        %s228 = sadd.s32 %s223, 2
        %s229 = scalar_select %p227, %s228, %s223
        %s230 = smul.u32 %s229, 24
        %s231 = scalar_lea.vmem [#allocation6], %s230
        %v232 = vld [vmem:[%s231] sm:$0xff]
        %v233 = vld [vmem:[%s231 + $0x8] sm:$0xff]
        %v234 = vld [vmem:[%s231 + $0x10] sm:$0xff]
        %s235 = sadd.s32 %s151, 9
        %s236 = sld [smem:[#allocation3 + %s235]]
        %v237 = vstv %s236
        %v238 = vmul.f32 %v237, %v232
        %s239 = sadd.s32 %s151, 10
        %s240 = sld [smem:[#allocation3 + %s239]]
        %v241 = vstv %s240
        %v242 = vmul.f32 %v241, %v233
        %v243 = vadd.f32 %v238, %v242
        %s244 = sadd.s32 %s151, 11
        %s245 = sld [smem:[#allocation3 + %s244]]
        %v246 = vstv %s245
        %v247 = vmul.f32 %v246, %v234
        %v248 = vadd.f32 %v243, %v247
        %s249 = scalar_lea.vmem [#allocation2], 24
        %250 = vst.msk [vmem:[%s249] sm:$0xff] %vm183, %v248
        %s251 = sadd.s32 %s151, 12
        %s252 = sld [smem:[#allocation3 + %s251]]
        %v253 = vstv %s252
        %v254 = vmul.f32 %v253, %v232
        %s255 = sadd.s32 %s151, 13
        %s256 = sld [smem:[#allocation3 + %s255]]
        %v257 = vstv %s256
        %v258 = vmul.f32 %v257, %v233
        %v259 = vadd.f32 %v254, %v258
        %s260 = sadd.s32 %s151, 14
        %s261 = sld [smem:[#allocation3 + %s260]]
        %v262 = vstv %s261
        %v263 = vmul.f32 %v262, %v234
        %v264 = vadd.f32 %v259, %v263
        %s265 = scalar_lea.vmem [#allocation2], 32
        %266 = vst.msk [vmem:[%s265] sm:$0xff] %vm183, %v264
        %s267 = sadd.s32 %s151, 15
        %s268 = sld [smem:[#allocation3 + %s267]]
        %v269 = vstv %s268
        %v270 = vmul.f32 %v269, %v232
        %s271 = sadd.s32 %s151, 16
        %s272 = sld [smem:[#allocation3 + %s271]]
        %v273 = vstv %s272
        %v274 = vmul.f32 %v273, %v233
        %v275 = vadd.f32 %v270, %v274
        %s276 = sadd.s32 %s151, 17
        %s277 = sld [smem:[#allocation3 + %s276]]
        %v278 = vstv %s277
        %v279 = vmul.f32 %v278, %v234
        %v280 = vadd.f32 %v275, %v279
        %s281 = scalar_lea.vmem [#allocation2], 40
        %282 = vst.msk [vmem:[%s281] sm:$0xff] %vm183, %v280
        %s283 = sadd.s32 %s152, 2
        %p284 = scmp.lt.s32.totalorder %s283, 0
        %s285 = ssub.s32 0, %s283
        %s286 = scalar_select %p284, %s285, %s283
        %s287 = sand.u32 %s286, 1
        %s288 = ssub.s32 0, %s287
        %s289 = scalar_select %p284, %s288, %s287
        %p290 = scmp.ne.s32.totalorder %s289, 0
        %p291 = scmp.lt.s32.totalorder %s289, 0
        %p292 = pnand %p291, %p290
        %p293 = pneg %p292
        %s294 = sadd.s32 %s289, 2
        %s295 = scalar_select %p293, %s294, %s289
        %s296 = smul.u32 %s295, 24
        %s297 = scalar_lea.vmem [#allocation6], %s296
        %v298 = vld [vmem:[%s297] sm:$0xff]
        %v299 = vld [vmem:[%s297 + $0x8] sm:$0xff]
        %v300 = vld [vmem:[%s297 + $0x10] sm:$0xff]
        %s301 = sadd.s32 %s151, 18
        %s302 = sld [smem:[#allocation3 + %s301]]
        %v303 = vstv %s302
        %v304 = vmul.f32 %v303, %v298
        %s305 = sadd.s32 %s151, 19
        %s306 = sld [smem:[#allocation3 + %s305]]
        %v307 = vstv %s306
        %v308 = vmul.f32 %v307, %v299
        %v309 = vadd.f32 %v304, %v308
        %s310 = sadd.s32 %s151, 20
        %s311 = sld [smem:[#allocation3 + %s310]]
        %v312 = vstv %s311
        %v313 = vmul.f32 %v312, %v300
        %v314 = vadd.f32 %v309, %v313
        %s315 = scalar_lea.vmem [#allocation2], 48
        %316 = vst.msk [vmem:[%s315] sm:$0xff] %vm183, %v314
        %s317 = sadd.s32 %s151, 21
        %s318 = sld [smem:[#allocation3 + %s317]]
        %v319 = vstv %s318
        %v320 = vmul.f32 %v319, %v298
        %s321 = sadd.s32 %s151, 22
        %s322 = sld [smem:[#allocation3 + %s321]]
        %v323 = vstv %s322
        %v324 = vmul.f32 %v323, %v299
        %v325 = vadd.f32 %v320, %v324
        %s326 = sadd.s32 %s151, 23
        %s327 = sld [smem:[#allocation3 + %s326]]
        %v328 = vstv %s327
        %v329 = vmul.f32 %v328, %v300
        %v330 = vadd.f32 %v325, %v329
        %s331 = scalar_lea.vmem [#allocation2], 56
        %332 = vst.msk [vmem:[%s331] sm:$0xff] %vm183, %v330
        %s333 = sadd.s32 %s151, 24
        %s334 = sld [smem:[#allocation3 + %s333]]
        %v335 = vstv %s334
        %v336 = vmul.f32 %v335, %v298
        %s337 = sadd.s32 %s151, 25
        %s338 = sld [smem:[#allocation3 + %s337]]
        %v339 = vstv %s338
        %v340 = vmul.f32 %v339, %v299
        %v341 = vadd.f32 %v336, %v340
        %s342 = sadd.s32 %s151, 26
        %s343 = sld [smem:[#allocation3 + %s342]]
        %v344 = vstv %s343
        %v345 = vmul.f32 %v344, %v300
        %v346 = vadd.f32 %v341, %v345
        %s347 = scalar_lea.vmem [#allocation2], 64
        %348 = vst.msk [vmem:[%s347] sm:$0xff] %vm183, %v346
        %v349 = vld [vmem:[#allocation2] sm:$0xff]
        %v350 = vld [vmem:[#allocation2 + $0x8] sm:$0xff]
        %v351 = vld [vmem:[#allocation2 + $0x10] sm:$0xff]
        %v352 = vld [vmem:[#allocation2 + $0x18] sm:$0xff]
        %v353 = vld [vmem:[#allocation2 + $0x20] sm:$0xff]
        %v354 = vld [vmem:[#allocation2 + $0x28] sm:$0xff]
        %v355 = vld [vmem:[#allocation2 + $0x30] sm:$0xff]
        %v356 = vld [vmem:[#allocation2 + $0x38] sm:$0xff]
        %v357 = vld [vmem:[#allocation2 + $0x40] sm:$0xff]
        %v358 = vrcp.pop 8.0
        %v359 = vmul.f32 8.0, %v358
        %v360 = vsub.f32 2.0, %v359
        %v361 = vmul.f32 %v358, %v360
        %v362 = vadd.f32 %v361, %v361
        %v363 = vadd.f32 %v362, %v361
        %v364 = vadd.f32 %v363, 1e-10
        %v365 = vrcp.pop %v364
        %v366 = vmul.f32 %v364, %v365
        %v367 = vsub.f32 2.0, %v366
        %v368 = vmul.f32 %v365, %v367
        %v369 = vmul.f32 %v361, %v368
        %v370 = vmul.f32 %v369, %v349
        %v371 = vmul.f32 %v369, %v350
        %v372 = vmul.f32 %v369, %v351
        %v373 = vmul.f32 %v369, %v352
        %v374 = vmul.f32 %v369, %v353
        %v375 = vmul.f32 %v369, %v354
        %v376 = vmul.f32 %v369, %v355
        %v377 = vmul.f32 %v369, %v356
        %v378 = vmul.f32 %v369, %v357
        %v379 = vsel %vm183, %v370, 0.0
        %v380 = vrot.slane %v379, 4
        %v381 = vadd.f32 %v379, %v380
        %v382 = vrot.slane %v381, 2
        %v383 = vadd.f32 %v381, %v382
        %v384 = vrot.slane %v383, 1
        %v385 = vadd.f32 %v383, %v384
        %v386 = vsel %vm183, %v371, 0.0
        %v387 = vrot.slane %v386, 4
        %v388 = vadd.f32 %v386, %v387
        %v389 = vrot.slane %v388, 2
        %v390 = vadd.f32 %v388, %v389
        %v391 = vrot.slane %v390, 1
        %v392 = vadd.f32 %v390, %v391
        %v393 = vsel %vm183, %v372, 0.0
        %v394 = vrot.slane %v393, 4
        %v395 = vadd.f32 %v393, %v394
        %v396 = vrot.slane %v395, 2
        %v397 = vadd.f32 %v395, %v396
        %v398 = vrot.slane %v397, 1
        %v399 = vadd.f32 %v397, %v398
        %v400 = vsel %vm183, %v373, 0.0
        %v401 = vrot.slane %v400, 4
        %v402 = vadd.f32 %v400, %v401
        %v403 = vrot.slane %v402, 2
        %v404 = vadd.f32 %v402, %v403
        %v405 = vrot.slane %v404, 1
        %v406 = vadd.f32 %v404, %v405
        %v407 = vsel %vm183, %v374, 0.0
        %v408 = vrot.slane %v407, 4
        %v409 = vadd.f32 %v407, %v408
        %v410 = vrot.slane %v409, 2
        %v411 = vadd.f32 %v409, %v410
        %v412 = vrot.slane %v411, 1
        %v413 = vadd.f32 %v411, %v412
        %v414 = vsel %vm183, %v375, 0.0
        %v415 = vrot.slane %v414, 4
        %v416 = vadd.f32 %v414, %v415
        %v417 = vrot.slane %v416, 2
        %v418 = vadd.f32 %v416, %v417
        %v419 = vrot.slane %v418, 1
        %v420 = vadd.f32 %v418, %v419
        %v421 = vsel %vm183, %v376, 0.0
        %v422 = vrot.slane %v421, 4
        %v423 = vadd.f32 %v421, %v422
        %v424 = vrot.slane %v423, 2
        %v425 = vadd.f32 %v423, %v424
        %v426 = vrot.slane %v425, 1
        %v427 = vadd.f32 %v425, %v426
        %v428 = vsel %vm183, %v377, 0.0
        %v429 = vrot.slane %v428, 4
        %v430 = vadd.f32 %v428, %v429
        %v431 = vrot.slane %v430, 2
        %v432 = vadd.f32 %v430, %v431
        %v433 = vrot.slane %v432, 1
        %v434 = vadd.f32 %v432, %v433
        %v435 = vsel %vm183, %v378, 0.0
        %v436 = vrot.slane %v435, 4
        %v437 = vadd.f32 %v435, %v436
        %v438 = vrot.slane %v437, 2
        %v439 = vadd.f32 %v437, %v438
        %v440 = vrot.slane %v439, 1
        %v441 = vadd.f32 %v439, %v440
        %v442 = vmul.f32 %v385, %v385
        %v443 = vmul.f32 %v392, %v392
        %v444 = vmul.f32 %v399, %v399
        %v445 = vmul.f32 %v406, %v406
        %v446 = vmul.f32 %v413, %v413
        %v447 = vmul.f32 %v420, %v420
        %v448 = vmul.f32 %v427, %v427
        %v449 = vmul.f32 %v434, %v434
        %v450 = vmul.f32 %v441, %v441
        %v451 = vsel %vm183, %v442, 0.0
        %v452 = vsel %vm183, %v443, 0.0
        %v453 = vadd.f32 %v451, %v452
        %v454 = vsel %vm183, %v444, 0.0
        %v455 = vadd.f32 %v453, %v454
        %v456 = vsel %vm183, %v445, 0.0
        %v457 = vsel %vm183, %v446, 0.0
        %v458 = vadd.f32 %v456, %v457
        %v459 = vsel %vm183, %v447, 0.0
        %v460 = vadd.f32 %v458, %v459
        %v461 = vsel %vm183, %v448, 0.0
        %v462 = vsel %vm183, %v449, 0.0
        %v463 = vadd.f32 %v461, %v462
        %v464 = vsel %vm183, %v450, 0.0
        %v465 = vadd.f32 %v463, %v464
        %v466 = vadd.f32 %v455, 1e-08
        %v467 = vadd.f32 %v460, 1e-08
        %v468 = vadd.f32 %v465, 1e-08
        %v469 = vrsqrt.pop %v466
        %v470 = vrsqrt.pop %v467
        %v471 = vrsqrt.pop %v468
        %v472 = vmul.f32 %v455, %v469
        %v473 = vmul.f32 %v460, %v470
        %v474 = vmul.f32 %v465, %v471
        %v475 = vadd.f32 %v455, 1.0
        %v476 = vadd.f32 %v460, 1.0
        %v477 = vadd.f32 %v465, 1.0
        %v478 = vrcp.pop %v475
        %v479 = vrcp.pop %v476
        %v480 = vrcp.pop %v477
        %v481 = vmul.f32 %v475, %v478
        %v482 = vmul.f32 %v476, %v479
        %v483 = vmul.f32 %v477, %v480
        %v484 = vsub.f32 2.0, %v481
        %v485 = vsub.f32 2.0, %v482
        %v486 = vsub.f32 2.0, %v483
        %v487 = vmul.f32 %v478, %v484
        %v488 = vmul.f32 %v479, %v485
        %v489 = vmul.f32 %v480, %v486
        %v490 = vmul.f32 %v472, %v487
        %v491 = vmul.f32 %v473, %v488
        %v492 = vmul.f32 %v474, %v489
        %v493 = vmul.f32 %v385, %v490
        %v494 = vmul.f32 %v392, %v490
        %v495 = vmul.f32 %v399, %v490
        %v496 = vmul.f32 %v406, %v491
        %v497 = vmul.f32 %v413, %v491
        %v498 = vmul.f32 %v420, %v491
        %v499 = vmul.f32 %v427, %v492
        %v500 = vmul.f32 %v434, %v492
        %v501 = vmul.f32 %v441, %v492
        %v502 = vmul.f32 %v493, %v349
        %v503 = vmul.f32 %v494, %v350
        %v504 = vmul.f32 %v495, %v351
        %v505 = vmul.f32 %v496, %v352
        %v506 = vmul.f32 %v497, %v353
        %v507 = vmul.f32 %v498, %v354
        %v508 = vmul.f32 %v499, %v355
        %v509 = vmul.f32 %v500, %v356
        %v510 = vmul.f32 %v501, %v357
        %v511 = vsel %vm183, %v502, 0.0
        %v512 = vsel %vm183, %v503, 0.0
        %v513 = vadd.f32 %v511, %v512
        %v514 = vsel %vm183, %v504, 0.0
        %v515 = vadd.f32 %v513, %v514
        %v516 = vsel %vm183, %v505, 0.0
        %v517 = vsel %vm183, %v506, 0.0
        %v518 = vadd.f32 %v516, %v517
        %v519 = vsel %vm183, %v507, 0.0
        %v520 = vadd.f32 %v518, %v519
        %v521 = vsel %vm183, %v508, 0.0
        %v522 = vsel %vm183, %v509, 0.0
        %v523 = vadd.f32 %v521, %v522
        %v524 = vsel %vm183, %v510, 0.0
        %v525 = vadd.f32 %v523, %v524
        %v526 = vadd.f32 %v515, 0.0
        %v527 = vadd.f32 %v520, 0.0
        %v528 = vadd.f32 %v525, 0.0
        %v529 = vsel %vm183, %v526, -inf
        %v530 = vrot.slane %v529, 4
        %v531 = vmax.f32 %v529, %v530
        %v532 = vrot.slane %v531, 2
        %v533 = vmax.f32 %v531, %v532
        %v534 = vrot.slane %v533, 1
        %v535 = vmax.f32 %v533, %v534
        %v536 = vsel %vm183, %v527, -inf
        %v537 = vrot.slane %v536, 4
        %v538 = vmax.f32 %v536, %v537
        %v539 = vrot.slane %v538, 2
        %v540 = vmax.f32 %v538, %v539
        %v541 = vrot.slane %v540, 1
        %v542 = vmax.f32 %v540, %v541
        %v543 = vsel %vm183, %v528, -inf
        %v544 = vrot.slane %v543, 4
        %v545 = vmax.f32 %v543, %v544
        %v546 = vrot.slane %v545, 2
        %v547 = vmax.f32 %v545, %v546
        %v548 = vrot.slane %v547, 1
        %v549 = vmax.f32 %v547, %v548
        %v550 = vsub.f32 %v526, %v535
        %v551 = vsub.f32 %v527, %v542
        %v552 = vsub.f32 %v528, %v549
        %v553 = vmul.f32 %v550, 1.442695
        %v554 = vpow.pop %v553
        %v555 = vmul.f32 %v551, 1.442695
        %v556 = vpow.pop %v555
        %v557 = vmul.f32 %v552, 1.442695
        %v558 = vpow.pop %v557
        %v559 = vsel %vm183, %v554, 0.0
        %v560 = vrot.slane %v559, 4
        %v561 = vadd.f32 %v559, %v560
        %v562 = vrot.slane %v561, 2
        %v563 = vadd.f32 %v561, %v562
        %v564 = vrot.slane %v563, 1
        %v565 = vadd.f32 %v563, %v564
        %v566 = vsel %vm183, %v556, 0.0
        %v567 = vrot.slane %v566, 4
        %v568 = vadd.f32 %v566, %v567
        %v569 = vrot.slane %v568, 2
        %v570 = vadd.f32 %v568, %v569
        %v571 = vrot.slane %v570, 1
        %v572 = vadd.f32 %v570, %v571
        %v573 = vsel %vm183, %v558, 0.0
        %v574 = vrot.slane %v573, 4
        %v575 = vadd.f32 %v573, %v574
        %v576 = vrot.slane %v575, 2
        %v577 = vadd.f32 %v575, %v576
        %v578 = vrot.slane %v577, 1
        %v579 = vadd.f32 %v577, %v578
        %v580 = vrcp.pop %v565
        %v581 = vrcp.pop %v572
        %v582 = vrcp.pop %v579
        %v583 = vmul.f32 %v565, %v580
        %v584 = vmul.f32 %v572, %v581
        %v585 = vmul.f32 %v579, %v582
        %v586 = vsub.f32 2.0, %v583
        %v587 = vsub.f32 2.0, %v584
        %v588 = vsub.f32 2.0, %v585
        %v589 = vmul.f32 %v580, %v586
        %v590 = vmul.f32 %v581, %v587
        %v591 = vmul.f32 %v582, %v588
        %v592 = vmul.f32 %v554, %v589
        %v593 = vmul.f32 %v556, %v590
        %v594 = vmul.f32 %v558, %v591
        %v595 = vsel %vm183, %v592, 0.0
        %v596 = vsel %vm183, %v593, 0.0
        %v597 = vadd.f32 %v595, %v596
        %v598 = vsel %vm183, %v594, 0.0
        %v599 = vadd.f32 %v597, %v598
        %v600 = vadd.f32 %v599, 1e-10
        %v601 = vrcp.pop %v600
        %v602 = vmul.f32 %v600, %v601
        %v603 = vsub.f32 2.0, %v602
        %v604 = vmul.f32 %v601, %v603
        %v605 = vmul.f32 %v592, %v604
        %v606 = vmul.f32 %v593, %v604
        %v607 = vmul.f32 %v594, %v604
        %v608 = vmul.f32 %v605, %v349
        %v609 = vmul.f32 %v605, %v350
        %v610 = vmul.f32 %v605, %v351
        %v611 = vmul.f32 %v606, %v352
        %v612 = vmul.f32 %v606, %v353
        %v613 = vmul.f32 %v606, %v354
        %v614 = vmul.f32 %v607, %v355
        %v615 = vmul.f32 %v607, %v356
        %v616 = vmul.f32 %v607, %v357
        %v617 = vsel %vm183, %v608, 0.0
        %v618 = vrot.slane %v617, 4
        %v619 = vadd.f32 %v617, %v618
        %v620 = vrot.slane %v619, 2
        %v621 = vadd.f32 %v619, %v620
        %v622 = vrot.slane %v621, 1
        %v623 = vadd.f32 %v621, %v622
        %v624 = vsel %vm183, %v609, 0.0
        %v625 = vrot.slane %v624, 4
        %v626 = vadd.f32 %v624, %v625
        %v627 = vrot.slane %v626, 2
        %v628 = vadd.f32 %v626, %v627
        %v629 = vrot.slane %v628, 1
        %v630 = vadd.f32 %v628, %v629
        %v631 = vsel %vm183, %v610, 0.0
        %v632 = vrot.slane %v631, 4
        %v633 = vadd.f32 %v631, %v632
        %v634 = vrot.slane %v633, 2
        %v635 = vadd.f32 %v633, %v634
        %v636 = vrot.slane %v635, 1
        %v637 = vadd.f32 %v635, %v636
        %v638 = vsel %vm183, %v611, 0.0
        %v639 = vrot.slane %v638, 4
        %v640 = vadd.f32 %v638, %v639
        %v641 = vrot.slane %v640, 2
        %v642 = vadd.f32 %v640, %v641
        %v643 = vrot.slane %v642, 1
        %v644 = vadd.f32 %v642, %v643
        %v645 = vsel %vm183, %v612, 0.0
        %v646 = vrot.slane %v645, 4
        %v647 = vadd.f32 %v645, %v646
        %v648 = vrot.slane %v647, 2
        %v649 = vadd.f32 %v647, %v648
        %v650 = vrot.slane %v649, 1
        %v651 = vadd.f32 %v649, %v650
        %v652 = vsel %vm183, %v613, 0.0
        %v653 = vrot.slane %v652, 4
        %v654 = vadd.f32 %v652, %v653
        %v655 = vrot.slane %v654, 2
        %v656 = vadd.f32 %v654, %v655
        %v657 = vrot.slane %v656, 1
        %v658 = vadd.f32 %v656, %v657
        %v659 = vsel %vm183, %v614, 0.0
        %v660 = vrot.slane %v659, 4
        %v661 = vadd.f32 %v659, %v660
        %v662 = vrot.slane %v661, 2
        %v663 = vadd.f32 %v661, %v662
        %v664 = vrot.slane %v663, 1
        %v665 = vadd.f32 %v663, %v664
        %v666 = vsel %vm183, %v615, 0.0
        %v667 = vrot.slane %v666, 4
        %v668 = vadd.f32 %v666, %v667
        %v669 = vrot.slane %v668, 2
        %v670 = vadd.f32 %v668, %v669
        %v671 = vrot.slane %v670, 1
        %v672 = vadd.f32 %v670, %v671
        %v673 = vsel %vm183, %v616, 0.0
        %v674 = vrot.slane %v673, 4
        %v675 = vadd.f32 %v673, %v674
        %v676 = vrot.slane %v675, 2
        %v677 = vadd.f32 %v675, %v676
        %v678 = vrot.slane %v677, 1
        %v679 = vadd.f32 %v677, %v678
        %v680 = vmul.f32 %v623, %v623
        %v681 = vmul.f32 %v630, %v630
        %v682 = vmul.f32 %v637, %v637
        %v683 = vmul.f32 %v644, %v644
        %v684 = vmul.f32 %v651, %v651
        %v685 = vmul.f32 %v658, %v658
        %v686 = vmul.f32 %v665, %v665
        %v687 = vmul.f32 %v672, %v672
        %v688 = vmul.f32 %v679, %v679
        %v689 = vsel %vm183, %v680, 0.0
        %v690 = vsel %vm183, %v681, 0.0
        %v691 = vadd.f32 %v689, %v690
        %v692 = vsel %vm183, %v682, 0.0
        %v693 = vadd.f32 %v691, %v692
        %v694 = vsel %vm183, %v683, 0.0
        %v695 = vsel %vm183, %v684, 0.0
        %v696 = vadd.f32 %v694, %v695
        %v697 = vsel %vm183, %v685, 0.0
        %v698 = vadd.f32 %v696, %v697
        %v699 = vsel %vm183, %v686, 0.0
        %v700 = vsel %vm183, %v687, 0.0
        %v701 = vadd.f32 %v699, %v700
        %v702 = vsel %vm183, %v688, 0.0
        %v703 = vadd.f32 %v701, %v702
        %v704 = vadd.f32 %v693, 1e-08
        %v705 = vadd.f32 %v698, 1e-08
        %v706 = vadd.f32 %v703, 1e-08
        %v707 = vrsqrt.pop %v704
        %v708 = vrsqrt.pop %v705
        %v709 = vrsqrt.pop %v706
        %v710 = vmul.f32 %v693, %v707
        %v711 = vmul.f32 %v698, %v708
        %v712 = vmul.f32 %v703, %v709
        %v713 = vadd.f32 %v693, 1.0
        %v714 = vadd.f32 %v698, 1.0
        %v715 = vadd.f32 %v703, 1.0
        %v716 = vrcp.pop %v713
        %v717 = vrcp.pop %v714
        %v718 = vrcp.pop %v715
        %v719 = vmul.f32 %v713, %v716
        %v720 = vmul.f32 %v714, %v717
        %v721 = vmul.f32 %v715, %v718
        %v722 = vsub.f32 2.0, %v719
        %v723 = vsub.f32 2.0, %v720
        %v724 = vsub.f32 2.0, %v721
        %v725 = vmul.f32 %v716, %v722
        %v726 = vmul.f32 %v717, %v723
        %v727 = vmul.f32 %v718, %v724
        %v728 = vmul.f32 %v710, %v725
        %v729 = vmul.f32 %v711, %v726
        %v730 = vmul.f32 %v712, %v727
        %v731 = vmul.f32 %v623, %v728
        %v732 = vmul.f32 %v630, %v728
        %v733 = vmul.f32 %v637, %v728
        %v734 = vmul.f32 %v644, %v729
        %v735 = vmul.f32 %v651, %v729
        %v736 = vmul.f32 %v658, %v729
        %v737 = vmul.f32 %v665, %v730
        %v738 = vmul.f32 %v672, %v730
        %v739 = vmul.f32 %v679, %v730
        %v740 = vmul.f32 %v731, %v349
        %v741 = vmul.f32 %v732, %v350
        %v742 = vmul.f32 %v733, %v351
        %v743 = vmul.f32 %v734, %v352
        %v744 = vmul.f32 %v735, %v353
        %v745 = vmul.f32 %v736, %v354
        %v746 = vmul.f32 %v737, %v355
        %v747 = vmul.f32 %v738, %v356
        %v748 = vmul.f32 %v739, %v357
        %v749 = vsel %vm183, %v740, 0.0
        %v750 = vsel %vm183, %v741, 0.0
        %v751 = vadd.f32 %v749, %v750
        %v752 = vsel %vm183, %v742, 0.0
        %v753 = vadd.f32 %v751, %v752
        %v754 = vsel %vm183, %v743, 0.0
        %v755 = vsel %vm183, %v744, 0.0
        %v756 = vadd.f32 %v754, %v755
        %v757 = vsel %vm183, %v745, 0.0
        %v758 = vadd.f32 %v756, %v757
        %v759 = vsel %vm183, %v746, 0.0
        %v760 = vsel %vm183, %v747, 0.0
        %v761 = vadd.f32 %v759, %v760
        %v762 = vsel %vm183, %v748, 0.0
        %v763 = vadd.f32 %v761, %v762
        %v764 = vadd.f32 %v526, %v753
        %v765 = vadd.f32 %v527, %v758
        %v766 = vadd.f32 %v528, %v763
        %v767 = vsel %vm183, %v764, -inf
        %v768 = vrot.slane %v767, 4
        %v769 = vmax.f32 %v767, %v768
        %v770 = vrot.slane %v769, 2
        %v771 = vmax.f32 %v769, %v770
        %v772 = vrot.slane %v771, 1
        %v773 = vmax.f32 %v771, %v772
        %v774 = vsel %vm183, %v765, -inf
        %v775 = vrot.slane %v774, 4
        %v776 = vmax.f32 %v774, %v775
        %v777 = vrot.slane %v776, 2
        %v778 = vmax.f32 %v776, %v777
        %v779 = vrot.slane %v778, 1
        %v780 = vmax.f32 %v778, %v779
        %v781 = vsel %vm183, %v766, -inf
        %v782 = vrot.slane %v781, 4
        %v783 = vmax.f32 %v781, %v782
        %v784 = vrot.slane %v783, 2
        %v785 = vmax.f32 %v783, %v784
        %v786 = vrot.slane %v785, 1
        %v787 = vmax.f32 %v785, %v786
        %v788 = vsub.f32 %v764, %v773
        %v789 = vsub.f32 %v765, %v780
        %v790 = vsub.f32 %v766, %v787
        %v791 = vmul.f32 %v788, 1.442695
        %v792 = vpow.pop %v791
        %v793 = vmul.f32 %v789, 1.442695
        %v794 = vpow.pop %v793
        %v795 = vmul.f32 %v790, 1.442695
        %v796 = vpow.pop %v795
        %v797 = vsel %vm183, %v792, 0.0
        %v798 = vrot.slane %v797, 4
        %v799 = vadd.f32 %v797, %v798
        %v800 = vrot.slane %v799, 2
        %v801 = vadd.f32 %v799, %v800
        %v802 = vrot.slane %v801, 1
        %v803 = vadd.f32 %v801, %v802
        %v804 = vsel %vm183, %v794, 0.0
        %v805 = vrot.slane %v804, 4
        %v806 = vadd.f32 %v804, %v805
        %v807 = vrot.slane %v806, 2
        %v808 = vadd.f32 %v806, %v807
        %v809 = vrot.slane %v808, 1
        %v810 = vadd.f32 %v808, %v809
        %v811 = vsel %vm183, %v796, 0.0
        %v812 = vrot.slane %v811, 4
        %v813 = vadd.f32 %v811, %v812
        %v814 = vrot.slane %v813, 2
        %v815 = vadd.f32 %v813, %v814
        %v816 = vrot.slane %v815, 1
        %v817 = vadd.f32 %v815, %v816
        %v818 = vrcp.pop %v803
        %v819 = vrcp.pop %v810
        %v820 = vrcp.pop %v817
        %v821 = vmul.f32 %v803, %v818
        %v822 = vmul.f32 %v810, %v819
        %v823 = vmul.f32 %v817, %v820
        %v824 = vsub.f32 2.0, %v821
        %v825 = vsub.f32 2.0, %v822
        %v826 = vsub.f32 2.0, %v823
        %v827 = vmul.f32 %v818, %v824
        %v828 = vmul.f32 %v819, %v825
        %v829 = vmul.f32 %v820, %v826
        %v830 = vmul.f32 %v792, %v827
        %v831 = vmul.f32 %v794, %v828
        %v832 = vmul.f32 %v796, %v829
        %v833 = vsel %vm183, %v830, 0.0
        %v834 = vsel %vm183, %v831, 0.0
        %v835 = vadd.f32 %v833, %v834
        %v836 = vsel %vm183, %v832, 0.0
        %v837 = vadd.f32 %v835, %v836
        %v838 = vadd.f32 %v837, 1e-10
        %v839 = vrcp.pop %v838
        %v840 = vmul.f32 %v838, %v839
        %v841 = vsub.f32 2.0, %v840
        %v842 = vmul.f32 %v839, %v841
        %v843 = vmul.f32 %v830, %v842
        %v844 = vmul.f32 %v831, %v842
        %v845 = vmul.f32 %v832, %v842
        %v846 = vmul.f32 %v843, %v349
        %v847 = vmul.f32 %v843, %v350
        %v848 = vmul.f32 %v843, %v351
        %v849 = vmul.f32 %v844, %v352
        %v850 = vmul.f32 %v844, %v353
        %v851 = vmul.f32 %v844, %v354
        %v852 = vmul.f32 %v845, %v355
        %v853 = vmul.f32 %v845, %v356
        %v854 = vmul.f32 %v845, %v357
        %v855 = vsel %vm183, %v846, 0.0
        %v856 = vrot.slane %v855, 4
        %v857 = vadd.f32 %v855, %v856
        %v858 = vrot.slane %v857, 2
        %v859 = vadd.f32 %v857, %v858
        %v860 = vrot.slane %v859, 1
        %v861 = vadd.f32 %v859, %v860
        %v862 = vsel %vm183, %v847, 0.0
        %v863 = vrot.slane %v862, 4
        %v864 = vadd.f32 %v862, %v863
        %v865 = vrot.slane %v864, 2
        %v866 = vadd.f32 %v864, %v865
        %v867 = vrot.slane %v866, 1
        %v868 = vadd.f32 %v866, %v867
        %v869 = vsel %vm183, %v848, 0.0
        %v870 = vrot.slane %v869, 4
        %v871 = vadd.f32 %v869, %v870
        %v872 = vrot.slane %v871, 2
        %v873 = vadd.f32 %v871, %v872
        %v874 = vrot.slane %v873, 1
        %v875 = vadd.f32 %v873, %v874
        %v876 = vsel %vm183, %v849, 0.0
        %v877 = vrot.slane %v876, 4
        %v878 = vadd.f32 %v876, %v877
        %v879 = vrot.slane %v878, 2
        %v880 = vadd.f32 %v878, %v879
        %v881 = vrot.slane %v880, 1
        %v882 = vadd.f32 %v880, %v881
        %v883 = vsel %vm183, %v850, 0.0
        %v884 = vrot.slane %v883, 4
        %v885 = vadd.f32 %v883, %v884
        %v886 = vrot.slane %v885, 2
        %v887 = vadd.f32 %v885, %v886
        %v888 = vrot.slane %v887, 1
        %v889 = vadd.f32 %v887, %v888
        %v890 = vsel %vm183, %v851, 0.0
        %v891 = vrot.slane %v890, 4
        %v892 = vadd.f32 %v890, %v891
        %v893 = vrot.slane %v892, 2
        %v894 = vadd.f32 %v892, %v893
        %v895 = vrot.slane %v894, 1
        %v896 = vadd.f32 %v894, %v895
        %v897 = vsel %vm183, %v852, 0.0
        %v898 = vrot.slane %v897, 4
        %v899 = vadd.f32 %v897, %v898
        %v900 = vrot.slane %v899, 2
        %v901 = vadd.f32 %v899, %v900
        %v902 = vrot.slane %v901, 1
        %v903 = vadd.f32 %v901, %v902
        %v904 = vsel %vm183, %v853, 0.0
        %v905 = vrot.slane %v904, 4
        %v906 = vadd.f32 %v904, %v905
        %v907 = vrot.slane %v906, 2
        %v908 = vadd.f32 %v906, %v907
        %v909 = vrot.slane %v908, 1
        %v910 = vadd.f32 %v908, %v909
        %v911 = vsel %vm183, %v854, 0.0
        %v912 = vrot.slane %v911, 4
        %v913 = vadd.f32 %v911, %v912
        %v914 = vrot.slane %v913, 2
        %v915 = vadd.f32 %v913, %v914
        %v916 = vrot.slane %v915, 1
        %v917 = vadd.f32 %v915, %v916
        %v918 = vmul.f32 %v861, %v861
        %v919 = vmul.f32 %v868, %v868
        %v920 = vmul.f32 %v875, %v875
        %v921 = vmul.f32 %v882, %v882
        %v922 = vmul.f32 %v889, %v889
        %v923 = vmul.f32 %v896, %v896
        %v924 = vmul.f32 %v903, %v903
        %v925 = vmul.f32 %v910, %v910
        %v926 = vmul.f32 %v917, %v917
        %v927 = vsel %vm183, %v918, 0.0
        %v928 = vsel %vm183, %v919, 0.0
        %v929 = vadd.f32 %v927, %v928
        %v930 = vsel %vm183, %v920, 0.0
        %v931 = vadd.f32 %v929, %v930
        %v932 = vsel %vm183, %v921, 0.0
        %v933 = vsel %vm183, %v922, 0.0
        %v934 = vadd.f32 %v932, %v933
        %v935 = vsel %vm183, %v923, 0.0
        %v936 = vadd.f32 %v934, %v935
        %v937 = vsel %vm183, %v924, 0.0
        %v938 = vsel %vm183, %v925, 0.0
        %v939 = vadd.f32 %v937, %v938
        %v940 = vsel %vm183, %v926, 0.0
        %v941 = vadd.f32 %v939, %v940
        %v942 = vadd.f32 %v931, 1e-08
        %v943 = vadd.f32 %v936, 1e-08
        %v944 = vadd.f32 %v941, 1e-08
        %v945 = vrsqrt.pop %v942
        %v946 = vrsqrt.pop %v943
        %v947 = vrsqrt.pop %v944
        %v948 = vmul.f32 %v931, %v945
        %v949 = vmul.f32 %v936, %v946
        %v950 = vmul.f32 %v941, %v947
        %v951 = vadd.f32 %v931, 1.0
        %v952 = vadd.f32 %v936, 1.0
        %v953 = vadd.f32 %v941, 1.0
        %v954 = vrcp.pop %v951
        %v955 = vrcp.pop %v952
        %v956 = vrcp.pop %v953
        %v957 = vmul.f32 %v951, %v954
        %v958 = vmul.f32 %v952, %v955
        %v959 = vmul.f32 %v953, %v956
        %v960 = vsub.f32 2.0, %v957
        %v961 = vsub.f32 2.0, %v958
        %v962 = vsub.f32 2.0, %v959
        %v963 = vmul.f32 %v954, %v960
        %v964 = vmul.f32 %v955, %v961
        %v965 = vmul.f32 %v956, %v962
        %v966 = vmul.f32 %v948, %v963
        %v967 = vmul.f32 %v949, %v964
        %v968 = vmul.f32 %v950, %v965
        %v969 = vmul.f32 %v861, %v966
        %v970 = vmul.f32 %v868, %v966
        %v971 = vmul.f32 %v875, %v966
        %v972 = vmul.f32 %v882, %v967
        %v973 = vmul.f32 %v889, %v967
        %v974 = vmul.f32 %v896, %v967
        %v975 = vmul.f32 %v903, %v968
        %v976 = vmul.f32 %v910, %v968
        %v977 = vmul.f32 %v917, %v968
        %vm987 = vcmask 1041409
        %v988 = vsel %vm987, %v970, %v969
        %vm989 = vcmask 1042434
        %v990 = vsel %vm989, %v971, %v988
        %v991 = vsel %vm987, %v973, %v972
        %v992 = vsel %vm989, %v974, %v991
        %v993 = vsel %vm987, %v976, %v975
        %v994 = vsel %vm989, %v977, %v993
        %vm998 = vcmask 59392
        %999 = vst.msk [vmem:[%s150] sm:$0x7] %vm998, %v990
        %1000 = vst.msk [vmem:[%s150 + $0x4] sm:$0x7] %vm998, %v992
        %1001 = vst.msk [vmem:[%s150 + $0x8] sm:$0x7] %vm998, %v994
        %p1002 = scmp.lt.s32.totalorder %s15, 1
        %s1003 = scalar_select %p1002, %s15, 1
        %s1004 = smul.addr %s1003, 3
        %s1005 = smul.addr %s1004, 4
        %s1006 = scalar_lea.vmem %s2, %s1005
        // Predicated region
        $region37: #{tpu_custom_call.1} parent=27 // pred_check
          %p1007 = pneg %p75
        $region38: #{tpu_custom_call.1} parent=27 // pred_check_branch
          %1009 = sbr.rel (%p1007) target = $region40
        $region39: #{tpu_custom_call.1} parent=27 // pred_region
          _
        $region40: #{tpu_custom_call.1} parent=27 // pred_fallthru
          _
      $region28: #{tpu_custom_call.1} parent=5 // pred_fallthru
        _
      %p1010 = scmp.le.s32.totalorder 2, %s10
      // Predicated region
      $region41: #{tpu_custom_call.1} parent=5 // pred_check
        %p1011 = pneg %p1010
      $region42: #{tpu_custom_call.1} parent=5 // pred_check_branch
        %1013 = sbr.rel (%p1011) target = $region44
      $region43: #{tpu_custom_call.1} parent=5 // pred_region
        %s1014 = ssub.s32 %s10, 2
        // Predicated region
        $region45: #{tpu_custom_call.1} parent=43 // pred_check
          %p1015 = pneg %p81
        $region46: #{tpu_custom_call.1} parent=43 // pred_check_branch
          %1017 = sbr.rel (%p1015) target = $region48
        $region47: #{tpu_custom_call.1} parent=43 // pred_region
          %p1018 = scmp.lt.s32.totalorder %s16, 1
          %s1019 = scalar_select %p1018, %s16, 1
          %s1020 = smul.addr %s1019, 3
          %s1021 = smul.addr %s1020, 4
          %s1022 = scalar_lea.vmem %s2, %s1021
        $region48: #{tpu_custom_call.1} parent=43 // pred_fallthru
          _
      $region44: #{tpu_custom_call.1} parent=5 // pred_fallthru
        _
    $region6: #{tpu_custom_call.1} parent=1 // loop_footer
      %s14 = sadd.s32 1, %s10
    $region7: #{tpu_custom_call.1} parent=1 // loop_footer_branch
      %9 = sbr.rel target = $region3
    $region8: #{tpu_custom_call.1} parent=1 // loop_exit
      _
    %1023 = vsyncpa [#allocation4], 1
    %s1024 = scalar_lea.sflag [#allocation4], 1
    %1025 = vsyncpa %s1024, 1
    %1026 = vsyncpa [#allocation5], 1
    %s1027 = scalar_lea.sflag [#allocation5], 1
    %1028 = vsyncpa %s1027, 1

</llo_original>
